<compile_context>
chip_gen: v5e
topology: v5e:2x2
jax: 0.10.0
libtpu: 0.0.40
codegen_flags: <defaults>
</compile_context>

<pallas_src>
import jax
import jax.numpy as jnp
from jax.experimental import pallas as pl
from jax.experimental.pallas import tpu as pltpu

# ---------------------------------------------------------------------------
# Model hyper-parameters (small, consistent with the module's __init__)
# ---------------------------------------------------------------------------
B = 2          # batch
T = 16         # sequence length
C = 32         # nb_filters (channels)
NCLASS = 4     # class_num
NDIL = 3       # dilations
DILS = [2 ** i for i in range(NDIL)]   # [1, 2, 4]
GN_EPS = 1e-8

NSTREAM = 2                    # forward / backward
NGROUP = B * NSTREAM           # 4 (sample, stream) groups along lanes
LANES = NGROUP * C             # 128 -- lane-dense working width
BC = B * C                     # 64
BK = B * NCLASS                # 8

# Parameter slab row layout (one (1, LANES) row per entry)
_ROW_BP = 0                              # pointwise-conv bias
_ROW_TAB0 = 1                            # 6 rows / dilation: (b,g,beta) x 2 blocks
_ROW_WL = _ROW_TAB0 + 6 * NDIL           # 19..21: weight_layer scalars (broadcast)
_ROW_FCB = _ROW_WL + NDIL                # 22: FC bias (first BK lanes)
_SLAB_ROWS = _ROW_FCB + 1                # 23


# ---------------------------------------------------------------------------
# Fused kernel: the entire TIMNETClassification forward in one invocation.
# Working array y has shape (T, LANES); lane l = b*2C + s*C + c with s=0 the
# forward stream (original time order) and s=1 the backward stream (time-
# reversed input), row t = time step.
# ---------------------------------------------------------------------------
def _fused_timnet_kernel(x_ref, wp_ref, wab_ref, slab_ref, cmean_ref,
                         fold_ref, fcw_ref, o_ref):
    f32 = jnp.float32
    x = x_ref[...]
    cmean = cmean_ref[...]
    row_t = jax.lax.broadcasted_iota(jnp.int32, (T, LANES), 0)

    def group_norm(h, gamma, beta):
        # GroupNorm(num_groups=1): stats over (T, C) per (sample, stream).
        # Time reduce on the sublane axis, then ONE group-average matmul on
        # the stacked [sum(h); sum(h^2)] rows; var = E[h^2] - mu^2 (f32).
        s1 = jnp.sum(h, axis=0, keepdims=True)                       # (1, LANES)
        s2 = jnp.sum(h * h, axis=0, keepdims=True)                   # (1, LANES)
        g = jnp.dot(jnp.concatenate([s1, s2], axis=0), cmean,
                    preferred_element_type=f32)                      # (2, LANES)
        mu = g[0:1, :]
        var = g[1:2, :] - mu * mu
        return (h - mu) * jax.lax.rsqrt(var + GN_EPS) * gamma + beta

    def conv_gn_relu(v, d, w_ab, bias, gamma, beta):
        # Causal dilated conv (k=2): W_a @ v[t-d] + W_b @ v[t] + b with both
        # taps fused into one K=2*LANES matmul.  The t-d shift is an XLU
        # sublane roll; the first d rows are re-zeroed (causal zero padding).
        v_shift = jnp.where(row_t >= d,
                            pltpu.roll(v, shift=d, axis=0), f32(0.0))
        h = jnp.dot(jnp.concatenate([v_shift, v], axis=1), w_ab,
                    preferred_element_type=f32) + bias
        return jnp.maximum(group_norm(h, gamma, beta), f32(0.0))

    # pointwise (k=1) causal convs for both streams & samples (block-diag W)
    y = (jnp.dot(x, wp_ref[...], preferred_element_type=f32)
         + slab_ref[_ROW_BP:_ROW_BP + 1, :])

    acc = jnp.zeros((T, LANES), f32)
    for idx, d in enumerate(DILS):                                   # unrolled
        base = _ROW_TAB0 + 6 * idx
        h1 = conv_gn_relu(y, d, wab_ref[2 * idx],
                          slab_ref[base + 0:base + 1, :],
                          slab_ref[base + 1:base + 2, :],
                          slab_ref[base + 2:base + 3, :])
        h2 = conv_gn_relu(h1, d, wab_ref[2 * idx + 1],
                          slab_ref[base + 3:base + 4, :],
                          slab_ref[base + 4:base + 5, :],
                          slab_ref[base + 5:base + 6, :])
        y = y * jax.nn.sigmoid(h2)                                   # TAB output
        # weight_layer[idx] * y as a VPU FMA; pooled once after the loop.
        acc = acc + slab_ref[_ROW_WL + idx:_ROW_WL + idx + 1, :] * y

    # adaptive-avg-pool over T + fwd/bwd fold (fold matrix carries the 1/T)
    acc_t = jnp.sum(acc, axis=0, keepdims=True)                      # (1, LANES)
    pooled = jnp.dot(acc_t, fold_ref[...], preferred_element_type=f32)  # (1, B*C)
    pooled = jnp.maximum(pooled, f32(0.0))                           # ReLU
    fcb = slab_ref[_ROW_FCB:_ROW_FCB + 1, :]
    logits = (jnp.dot(pooled, fcw_ref[...], preferred_element_type=f32)
              + fcb[:, :BK])                                         # (1, B*NCLASS)
    o_ref[...] = logits.astype(o_ref.dtype)


# ---------------------------------------------------------------------------
# One-time parameter packing (hoisted out of the per-call path)
# ---------------------------------------------------------------------------
def _block_diag(*blocks):
    n = sum(b.shape[0] for b in blocks)
    m = sum(b.shape[1] for b in blocks)
    out = jnp.zeros((n, m), jnp.float32)
    r = c = 0
    for blk in blocks:
        out = out.at[r:r + blk.shape[0], c:c + blk.shape[1]].set(blk)
        r += blk.shape[0]
        c += blk.shape[1]
    return out


def _lane_row(f_row, b_row):
    # (1, C) fwd / bwd rows -> (1, LANES), layout [fwd, bwd] repeated per sample.
    return jnp.tile(jnp.concatenate([f_row, b_row], axis=1), (1, B))


def pack_params(p):
    """Pack weights into the kernel's lane-dense layout.  Call ONCE at load."""
    wp = _block_diag(*([p["fwd_w"], p["bwd_w"]] * B))                # (128, 128)

    rows = [_lane_row(p["fwd_b"], p["bwd_b"])]                       # pointwise bias
    wab = []
    for idx in range(NDIL):
        pf, pb = p["tab_f"][idx], p["tab_b"][idx]
        for blk in range(2):                                         # block_1/block_2
            o = 5 * blk
            wa = _block_diag(*([pf[o + 0], pb[o + 0]] * B))          # tap on x[t-d]
            wb = _block_diag(*([pf[o + 1], pb[o + 1]] * B))          # tap on x[t]
            wab.append(jnp.concatenate([wa, wb], axis=0))            # (256, 128)
            rows.append(_lane_row(pf[o + 2], pb[o + 2]))             # bias
            rows.append(_lane_row(pf[o + 3], pb[o + 3]))             # gamma
            rows.append(_lane_row(pf[o + 4], pb[o + 4]))             # beta
    for idx in range(NDIL):                                          # weight_layer
        rows.append(jnp.broadcast_to(p["weight_layer"][idx, 0], (1, LANES)))
    fcb_row = jnp.zeros((1, LANES), jnp.float32)
    fcb_row = fcb_row.at[0, :BK].set(jnp.tile(p["fc_b"].reshape(-1), B))
    rows.append(fcb_row)

    slab = jnp.concatenate(rows, axis=0)                             # (23, 128)
    wab = jnp.stack(wab)                                             # (6, 256, 128)

    # structure constants: per-(sample,stream) channel/time averaging + fold
    lane = jnp.arange(LANES)
    cmean = jnp.where(lane[:, None] // C == lane[None, :] // C,
                      1.0 / (T * C), 0.0).astype(jnp.float32)        # (128, 128)
    m = jnp.arange(BC)
    fold = jnp.where((lane[:, None] // (2 * C) == m[None, :] // C)
                     & (lane[:, None] % C == m[None, :] % C),
                     1.0 / T, 0.0).astype(jnp.float32)               # (128, 64)
    fcw = _block_diag(*([p["fc_w"]] * B))                            # (64, 8)

    return {"wp": wp, "wab": wab, "slab": slab, "cmean": cmean,
            "fold": fold, "fcw": fcw}


# ---------------------------------------------------------------------------
# Per-call forward (activation packing only + the fused kernel)
# ---------------------------------------------------------------------------
_VMEM_SPEC = pl.BlockSpec(memory_space=pltpu.MemorySpace.VMEM)

_FLOPS = (2 * T * LANES * LANES                                      # pointwise conv
          + NDIL * 2 * (2 * T * (2 * LANES) * LANES                  # fused conv taps
                        + 2 * 2 * LANES * LANES)                     # GN stats matmul
          + 2 * LANES * BC + 2 * BC * BK)                            # fold + FC
_TRANSCENDENTALS = NDIL * 2 * LANES + NDIL * T * LANES               # rsqrt + sigmoid
_BYTES = 4 * (T * LANES + LANES * LANES + 2 * NDIL * 2 * LANES * LANES
              + _SLAB_ROWS * LANES + LANES * LANES + LANES * BC + BC * BK + BK)


@jax.jit
def timnet_forward(x_nct, packed):
    """TIMNETClassification forward. x_nct is (B, C, T) PyTorch NCW layout;
    `packed` is the pack_params() output (weights packed once at load)."""
    x_t = jnp.transpose(x_nct, (2, 0, 1)).astype(jnp.float32)        # (T, B, C)
    xin = jnp.stack([x_t, x_t[::-1]], axis=2).reshape(T, LANES)      # fwd|bwd lanes

    logits = pl.pallas_call(
        _fused_timnet_kernel,
        out_shape=jax.ShapeDtypeStruct((1, BK), jnp.float32),
        in_specs=[_VMEM_SPEC] * 7,
        out_specs=_VMEM_SPEC,
        cost_estimate=pl.CostEstimate(flops=_FLOPS,
                                      transcendentals=_TRANSCENDENTALS,
                                      bytes_accessed=_BYTES),
    )(xin, packed["wp"], packed["wab"], packed["slab"], packed["cmean"],
      packed["fold"], packed["fcw"])
    return logits.reshape(B, NCLASS)


# ---------------------------------------------------------------------------
# Pure-JAX reference (unpacked, per-stream) for validation
# ---------------------------------------------------------------------------
def reference_forward(x_nct, P):
    x = jnp.transpose(x_nct, (0, 2, 1))
    xr = x[:, ::-1, :]

    def pconv(v, w, b):
        return jnp.einsum("btc,cd->btd", v, w) + b

    def tab(v, p, d):
        w1a, w1b, b1, g1, be1, w2a, w2b, b2, g2, be2 = p

        def cgr(u, wa, wb, bb, g, be):
            ush = jnp.pad(u, ((0, 0), (d, 0), (0, 0)))[:, : u.shape[1], :]
            h = (jnp.einsum("btc,cd->btd", ush, wa)
                 + jnp.einsum("btc,cd->btd", u, wb) + bb)
            mu = jnp.mean(h, axis=(1, 2), keepdims=True)
            var = jnp.mean((h - mu) ** 2, axis=(1, 2), keepdims=True)
            h = (h - mu) / jnp.sqrt(var + GN_EPS) * g + be
            return jnp.maximum(h, 0.0)

        h1 = cgr(v, w1a, w1b, b1, g1, be1)
        h2 = cgr(h1, w2a, w2b, b2, g2, be2)
        return v * jax.nn.sigmoid(h2)

    f = pconv(x, P["fwd_w"], P["fwd_b"])
    b_ = pconv(xr, P["bwd_w"], P["bwd_b"])
    skips = []
    for idx, d in enumerate(DILS):
        f = tab(f, P["tab_f"][idx], d)
        b_ = tab(b_, P["tab_b"][idx], d)
        skips.append(jnp.mean(f + b_, axis=1))             # (B, C)
    S = jnp.stack(skips, axis=1)                           # (B, D, C)
    out = jnp.sum(S * P["weight_layer"][None, :, :], axis=1)
    out = jnp.maximum(out, 0.0)
    return out @ P["fc_w"] + P["fc_b"]


# ---------------------------------------------------------------------------
# Deterministic parameter init (mirrors the PyTorch __init__ shapes)
# ---------------------------------------------------------------------------
def init_params(key):
    state = {"key": key}

    def nxt():
        state["key"], sub = jax.random.split(state["key"])
        return sub

    def conv_k2():
        # PyTorch weight (Cout, Cin, K=2) ~ N(0, 0.01); transpose to (Cin, Cout) taps.
        w = 0.01 * jax.random.normal(nxt(), (C, C, 2), jnp.float32)
        wa = jnp.transpose(w[:, :, 0])     # applied to x[t - d]
        wb = jnp.transpose(w[:, :, 1])     # applied to x[t]
        b = 0.05 * jax.random.normal(nxt(), (1, C), jnp.float32)
        gamma = jnp.ones((1, C), jnp.float32)      # GroupNorm affine defaults
        beta = jnp.zeros((1, C), jnp.float32)
        return wa, wb, b, gamma, beta

    def tab_params():
        return conv_k2() + conv_k2()       # block_1 + block_2 -> 10 arrays

    def conv_k1():
        w = 0.01 * jax.random.normal(nxt(), (C, C, 1), jnp.float32)
        b = 0.05 * jax.random.normal(nxt(), (1, C), jnp.float32)
        return jnp.transpose(w[:, :, 0]), b

    fwd_w, fwd_b = conv_k1()
    bwd_w, bwd_b = conv_k1()
    return {
        "fwd_w": fwd_w, "fwd_b": fwd_b,
        "bwd_w": bwd_w, "bwd_b": bwd_b,
        "tab_f": [tab_params() for _ in range(NDIL)],
        "tab_b": [tab_params() for _ in range(NDIL)],
        "weight_layer": jax.random.normal(nxt(), (NDIL, 1), jnp.float32),
        "fc_w": 0.1 * jax.random.normal(nxt(), (C, NCLASS), jnp.float32),
        "fc_b": 0.1 * jax.random.normal(nxt(), (1, NCLASS), jnp.float32),
    }


if __name__ == "__main__":
    key = jax.random.PRNGKey(0)
    pkey, xkey = jax.random.split(key)
    params = init_params(pkey)
    packed = pack_params(params)                           # one-time packing
    x = jax.random.normal(xkey, (B, C, T), jnp.float32)    # PyTorch NCW input

    out = timnet_forward(x, packed)
    out = jax.block_until_ready(out)
    assert out.shape == (B, NCLASS), out.shape

    ref = reference_forward(x, params)
    err = float(jnp.max(jnp.abs(out - ref)))
    assert err < 1e-3, f"mismatch vs reference: {err}"

    print("KERNEL_OK")
</pallas_src>

<mosaic_0001>
module attributes {stable_mosaic.version = 11 : i64} {
  func.func @_fused_timnet_kernel(%arg0: memref<16x128xf32, #tpu.memory_space<vmem>>, %arg1: memref<128x128xf32, #tpu.memory_space<vmem>>, %arg2: memref<6x256x128xf32, #tpu.memory_space<vmem>>, %arg3: memref<23x128xf32, #tpu.memory_space<vmem>>, %arg4: memref<128x128xf32, #tpu.memory_space<vmem>>, %arg5: memref<128x64xf32, #tpu.memory_space<vmem>>, %arg6: memref<64x8xf32, #tpu.memory_space<vmem>>, %arg7: memref<1x8xf32, #tpu.memory_space<vmem>>) attributes {dimension_semantics = [], scalar_prefetch = 0 : i64, scratch_operands = 0 : i64, tpu.core_type = #tpu.core_type<tc>} {
    %c0 = arith.constant 0 : index
    %c0_0 = arith.constant 0 : index
    %0 = vector.load %arg0[%c0, %c0_0] : memref<16x128xf32, #tpu.memory_space<vmem>>, vector<16x128xf32>
    %c0_1 = arith.constant 0 : index
    %c0_2 = arith.constant 0 : index
    %1 = vector.load %arg4[%c0_1, %c0_2] : memref<128x128xf32, #tpu.memory_space<vmem>>, vector<128x128xf32>
    %2 = tpu.iota {dimensions = array<i32: 0>} : vector<16x128xi32>
    %c0_3 = arith.constant 0 : index
    %c0_4 = arith.constant 0 : index
    %3 = vector.load %arg1[%c0_3, %c0_4] : memref<128x128xf32, #tpu.memory_space<vmem>>, vector<128x128xf32>
    %cst = arith.constant dense<0.000000e+00> : vector<16x128xf32>
    %4 = tpu.matmul %0, %3, %cst {dimension_numbers = #tpu.dot_dimension_numbers<[1], [0], [0], [1], [0, 0, 1, 1], [], []>} : vector<16x128xf32>, vector<128x128xf32>, vector<16x128xf32> -> vector<16x128xf32>
    %c0_5 = arith.constant 0 : index
    %c0_6 = arith.constant 0 : index
    %5 = vector.load %arg3[%c0_5, %c0_6] : memref<23x128xf32, #tpu.memory_space<vmem>>, vector<1x128xf32>
    %6 = vector.broadcast %5 : vector<1x128xf32> to vector<16x128xf32>
    %7 = arith.addf %4, %6 : vector<16x128xf32>
    %cst_7 = arith.constant 0.000000e+00 : f32
    %8 = vector.broadcast %cst_7 : f32 to vector<16x128xf32>
    %c0_8 = arith.constant 0 : index
    %c0_9 = arith.constant 0 : index
    %c0_10 = arith.constant 0 : index
    %9 = vector.load %arg2[%c0_8, %c0_9, %c0_10] : memref<6x256x128xf32, #tpu.memory_space<vmem>>, vector<1x256x128xf32>
    %10 = vector.shape_cast %9 : vector<1x256x128xf32> to vector<256x128xf32>
    %c1 = arith.constant 1 : index
    %c0_11 = arith.constant 0 : index
    %11 = vector.load %arg3[%c1, %c0_11] : memref<23x128xf32, #tpu.memory_space<vmem>>, vector<1x128xf32>
    %c2 = arith.constant 2 : index
    %c0_12 = arith.constant 0 : index
    %12 = vector.load %arg3[%c2, %c0_12] : memref<23x128xf32, #tpu.memory_space<vmem>>, vector<1x128xf32>
    %c3 = arith.constant 3 : index
    %c0_13 = arith.constant 0 : index
    %13 = vector.load %arg3[%c3, %c0_13] : memref<23x128xf32, #tpu.memory_space<vmem>>, vector<1x128xf32>
    %c1_i32 = arith.constant 1 : i32
    %14 = vector.broadcast %c1_i32 : i32 to vector<16x128xi32>
    %15 = arith.cmpi sge, %2, %14 : vector<16x128xi32>
    %c1_i32_14 = arith.constant 1 : i32
    %16 = tpu.dynamic_rotate %7 by %c1_i32_14 dim 0 : vector<16x128xf32>, i32 -> vector<16x128xf32>
    %cst_15 = arith.constant 0.000000e+00 : f32
    %17 = vector.broadcast %cst_15 : f32 to vector<16x128xf32>
    %18 = arith.select %15, %16, %17 : vector<16x128xi1>, vector<16x128xf32>
    %19 = tpu.concatenate %18, %7 in 1 : vector<16x128xf32>, vector<16x128xf32> -> vector<16x256xf32>
    %cst_16 = arith.constant dense<0.000000e+00> : vector<16x128xf32>
    %20 = tpu.matmul %19, %10, %cst_16 {dimension_numbers = #tpu.dot_dimension_numbers<[1], [0], [0], [1], [0, 0, 1, 1], [], []>} : vector<16x256xf32>, vector<256x128xf32>, vector<16x128xf32> -> vector<16x128xf32>
    %21 = vector.broadcast %11 : vector<1x128xf32> to vector<16x128xf32>
    %22 = arith.addf %20, %21 : vector<16x128xf32>
    %cst_17 = arith.constant dense<0.000000e+00> : vector<128xf32>
    %23 = vector.multi_reduction <add>, %22, %cst_17 [0] : vector<16x128xf32> to vector<128xf32>
    %24 = vector.shape_cast %23 : vector<128xf32> to vector<1x128xf32>
    %25 = arith.mulf %22, %22 : vector<16x128xf32>
    %cst_18 = arith.constant dense<0.000000e+00> : vector<128xf32>
    %26 = vector.multi_reduction <add>, %25, %cst_18 [0] : vector<16x128xf32> to vector<128xf32>
    %27 = vector.shape_cast %26 : vector<128xf32> to vector<1x128xf32>
    %28 = tpu.concatenate %24, %27 in 0 : vector<1x128xf32>, vector<1x128xf32> -> vector<2x128xf32>
    %cst_19 = arith.constant dense<0.000000e+00> : vector<2x128xf32>
    %29 = tpu.matmul %28, %1, %cst_19 {dimension_numbers = #tpu.dot_dimension_numbers<[1], [0], [0], [1], [0, 0, 1, 1], [], []>} : vector<2x128xf32>, vector<128x128xf32>, vector<2x128xf32> -> vector<2x128xf32>
    %30 = vector.extract_strided_slice %29 {offsets = [0, 0], sizes = [1, 128], strides = [1, 1]} : vector<2x128xf32> to vector<1x128xf32>
    %31 = vector.extract_strided_slice %29 {offsets = [1, 0], sizes = [1, 128], strides = [1, 1]} : vector<2x128xf32> to vector<1x128xf32>
    %32 = arith.mulf %30, %30 : vector<1x128xf32>
    %33 = arith.subf %31, %32 : vector<1x128xf32>
    %34 = vector.broadcast %30 : vector<1x128xf32> to vector<16x128xf32>
    %35 = arith.subf %22, %34 : vector<16x128xf32>
    %cst_20 = arith.constant 9.99999993E-9 : f32
    %36 = vector.broadcast %cst_20 : f32 to vector<1x128xf32>
    %37 = arith.addf %33, %36 : vector<1x128xf32>
    %38 = math.rsqrt %37 : vector<1x128xf32>
    %39 = vector.broadcast %38 : vector<1x128xf32> to vector<16x128xf32>
    %40 = arith.mulf %35, %39 : vector<16x128xf32>
    %41 = vector.broadcast %12 : vector<1x128xf32> to vector<16x128xf32>
    %42 = arith.mulf %40, %41 : vector<16x128xf32>
    %43 = vector.broadcast %13 : vector<1x128xf32> to vector<16x128xf32>
    %44 = arith.addf %42, %43 : vector<16x128xf32>
    %cst_21 = arith.constant 0.000000e+00 : f32
    %45 = vector.broadcast %cst_21 : f32 to vector<16x128xf32>
    %46 = arith.maximumf %44, %45 : vector<16x128xf32>
    %c1_22 = arith.constant 1 : index
    %c0_23 = arith.constant 0 : index
    %c0_24 = arith.constant 0 : index
    %47 = vector.load %arg2[%c1_22, %c0_23, %c0_24] : memref<6x256x128xf32, #tpu.memory_space<vmem>>, vector<1x256x128xf32>
    %48 = vector.shape_cast %47 : vector<1x256x128xf32> to vector<256x128xf32>
    %c4 = arith.constant 4 : index
    %c0_25 = arith.constant 0 : index
    %49 = vector.load %arg3[%c4, %c0_25] : memref<23x128xf32, #tpu.memory_space<vmem>>, vector<1x128xf32>
    %c5 = arith.constant 5 : index
    %c0_26 = arith.constant 0 : index
    %50 = vector.load %arg3[%c5, %c0_26] : memref<23x128xf32, #tpu.memory_space<vmem>>, vector<1x128xf32>
    %c6 = arith.constant 6 : index
    %c0_27 = arith.constant 0 : index
    %51 = vector.load %arg3[%c6, %c0_27] : memref<23x128xf32, #tpu.memory_space<vmem>>, vector<1x128xf32>
    %c1_i32_28 = arith.constant 1 : i32
    %52 = vector.broadcast %c1_i32_28 : i32 to vector<16x128xi32>
    %53 = arith.cmpi sge, %2, %52 : vector<16x128xi32>
    %c1_i32_29 = arith.constant 1 : i32
    %54 = tpu.dynamic_rotate %46 by %c1_i32_29 dim 0 : vector<16x128xf32>, i32 -> vector<16x128xf32>
    %cst_30 = arith.constant 0.000000e+00 : f32
    %55 = vector.broadcast %cst_30 : f32 to vector<16x128xf32>
    %56 = arith.select %53, %54, %55 : vector<16x128xi1>, vector<16x128xf32>
    %57 = tpu.concatenate %56, %46 in 1 : vector<16x128xf32>, vector<16x128xf32> -> vector<16x256xf32>
    %cst_31 = arith.constant dense<0.000000e+00> : vector<16x128xf32>
    %58 = tpu.matmul %57, %48, %cst_31 {dimension_numbers = #tpu.dot_dimension_numbers<[1], [0], [0], [1], [0, 0, 1, 1], [], []>} : vector<16x256xf32>, vector<256x128xf32>, vector<16x128xf32> -> vector<16x128xf32>
    %59 = vector.broadcast %49 : vector<1x128xf32> to vector<16x128xf32>
    %60 = arith.addf %58, %59 : vector<16x128xf32>
    %cst_32 = arith.constant dense<0.000000e+00> : vector<128xf32>
    %61 = vector.multi_reduction <add>, %60, %cst_32 [0] : vector<16x128xf32> to vector<128xf32>
    %62 = vector.shape_cast %61 : vector<128xf32> to vector<1x128xf32>
    %63 = arith.mulf %60, %60 : vector<16x128xf32>
    %cst_33 = arith.constant dense<0.000000e+00> : vector<128xf32>
    %64 = vector.multi_reduction <add>, %63, %cst_33 [0] : vector<16x128xf32> to vector<128xf32>
    %65 = vector.shape_cast %64 : vector<128xf32> to vector<1x128xf32>
    %66 = tpu.concatenate %62, %65 in 0 : vector<1x128xf32>, vector<1x128xf32> -> vector<2x128xf32>
    %cst_34 = arith.constant dense<0.000000e+00> : vector<2x128xf32>
    %67 = tpu.matmul %66, %1, %cst_34 {dimension_numbers = #tpu.dot_dimension_numbers<[1], [0], [0], [1], [0, 0, 1, 1], [], []>} : vector<2x128xf32>, vector<128x128xf32>, vector<2x128xf32> -> vector<2x128xf32>
    %68 = vector.extract_strided_slice %67 {offsets = [0, 0], sizes = [1, 128], strides = [1, 1]} : vector<2x128xf32> to vector<1x128xf32>
    %69 = vector.extract_strided_slice %67 {offsets = [1, 0], sizes = [1, 128], strides = [1, 1]} : vector<2x128xf32> to vector<1x128xf32>
    %70 = arith.mulf %68, %68 : vector<1x128xf32>
    %71 = arith.subf %69, %70 : vector<1x128xf32>
    %72 = vector.broadcast %68 : vector<1x128xf32> to vector<16x128xf32>
    %73 = arith.subf %60, %72 : vector<16x128xf32>
    %cst_35 = arith.constant 9.99999993E-9 : f32
    %74 = vector.broadcast %cst_35 : f32 to vector<1x128xf32>
    %75 = arith.addf %71, %74 : vector<1x128xf32>
    %76 = math.rsqrt %75 : vector<1x128xf32>
    %77 = vector.broadcast %76 : vector<1x128xf32> to vector<16x128xf32>
    %78 = arith.mulf %73, %77 : vector<16x128xf32>
    %79 = vector.broadcast %50 : vector<1x128xf32> to vector<16x128xf32>
    %80 = arith.mulf %78, %79 : vector<16x128xf32>
    %81 = vector.broadcast %51 : vector<1x128xf32> to vector<16x128xf32>
    %82 = arith.addf %80, %81 : vector<16x128xf32>
    %cst_36 = arith.constant 0.000000e+00 : f32
    %83 = vector.broadcast %cst_36 : f32 to vector<16x128xf32>
    %84 = arith.maximumf %82, %83 : vector<16x128xf32>
    %85 = arith.negf %84 : vector<16x128xf32>
    %86 = math.exp %85 : vector<16x128xf32>
    %cst_37 = arith.constant 1.000000e+00 : f32
    %87 = vector.broadcast %cst_37 : f32 to vector<16x128xf32>
    %88 = arith.addf %87, %86 : vector<16x128xf32>
    %89 = arith.divf %87, %88 : vector<16x128xf32>
    %90 = arith.mulf %7, %89 : vector<16x128xf32>
    %c19 = arith.constant 19 : index
    %c0_38 = arith.constant 0 : index
    %91 = vector.load %arg3[%c19, %c0_38] : memref<23x128xf32, #tpu.memory_space<vmem>>, vector<1x128xf32>
    %92 = vector.broadcast %91 : vector<1x128xf32> to vector<16x128xf32>
    %93 = arith.mulf %92, %90 : vector<16x128xf32>
    %94 = arith.addf %8, %93 : vector<16x128xf32>
    %c2_39 = arith.constant 2 : index
    %c0_40 = arith.constant 0 : index
    %c0_41 = arith.constant 0 : index
    %95 = vector.load %arg2[%c2_39, %c0_40, %c0_41] : memref<6x256x128xf32, #tpu.memory_space<vmem>>, vector<1x256x128xf32>
    %96 = vector.shape_cast %95 : vector<1x256x128xf32> to vector<256x128xf32>
    %c7 = arith.constant 7 : index
    %c0_42 = arith.constant 0 : index
    %97 = vector.load %arg3[%c7, %c0_42] : memref<23x128xf32, #tpu.memory_space<vmem>>, vector<1x128xf32>
    %c8 = arith.constant 8 : index
    %c0_43 = arith.constant 0 : index
    %98 = vector.load %arg3[%c8, %c0_43] : memref<23x128xf32, #tpu.memory_space<vmem>>, vector<1x128xf32>
    %c9 = arith.constant 9 : index
    %c0_44 = arith.constant 0 : index
    %99 = vector.load %arg3[%c9, %c0_44] : memref<23x128xf32, #tpu.memory_space<vmem>>, vector<1x128xf32>
    %c2_i32 = arith.constant 2 : i32
    %100 = vector.broadcast %c2_i32 : i32 to vector<16x128xi32>
    %101 = arith.cmpi sge, %2, %100 : vector<16x128xi32>
    %c2_i32_45 = arith.constant 2 : i32
    %102 = tpu.dynamic_rotate %90 by %c2_i32_45 dim 0 : vector<16x128xf32>, i32 -> vector<16x128xf32>
    %cst_46 = arith.constant 0.000000e+00 : f32
    %103 = vector.broadcast %cst_46 : f32 to vector<16x128xf32>
    %104 = arith.select %101, %102, %103 : vector<16x128xi1>, vector<16x128xf32>
    %105 = tpu.concatenate %104, %90 in 1 : vector<16x128xf32>, vector<16x128xf32> -> vector<16x256xf32>
    %cst_47 = arith.constant dense<0.000000e+00> : vector<16x128xf32>
    %106 = tpu.matmul %105, %96, %cst_47 {dimension_numbers = #tpu.dot_dimension_numbers<[1], [0], [0], [1], [0, 0, 1, 1], [], []>} : vector<16x256xf32>, vector<256x128xf32>, vector<16x128xf32> -> vector<16x128xf32>
    %107 = vector.broadcast %97 : vector<1x128xf32> to vector<16x128xf32>
    %108 = arith.addf %106, %107 : vector<16x128xf32>
    %cst_48 = arith.constant dense<0.000000e+00> : vector<128xf32>
    %109 = vector.multi_reduction <add>, %108, %cst_48 [0] : vector<16x128xf32> to vector<128xf32>
    %110 = vector.shape_cast %109 : vector<128xf32> to vector<1x128xf32>
    %111 = arith.mulf %108, %108 : vector<16x128xf32>
    %cst_49 = arith.constant dense<0.000000e+00> : vector<128xf32>
    %112 = vector.multi_reduction <add>, %111, %cst_49 [0] : vector<16x128xf32> to vector<128xf32>
    %113 = vector.shape_cast %112 : vector<128xf32> to vector<1x128xf32>
    %114 = tpu.concatenate %110, %113 in 0 : vector<1x128xf32>, vector<1x128xf32> -> vector<2x128xf32>
    %cst_50 = arith.constant dense<0.000000e+00> : vector<2x128xf32>
    %115 = tpu.matmul %114, %1, %cst_50 {dimension_numbers = #tpu.dot_dimension_numbers<[1], [0], [0], [1], [0, 0, 1, 1], [], []>} : vector<2x128xf32>, vector<128x128xf32>, vector<2x128xf32> -> vector<2x128xf32>
    %116 = vector.extract_strided_slice %115 {offsets = [0, 0], sizes = [1, 128], strides = [1, 1]} : vector<2x128xf32> to vector<1x128xf32>
    %117 = vector.extract_strided_slice %115 {offsets = [1, 0], sizes = [1, 128], strides = [1, 1]} : vector<2x128xf32> to vector<1x128xf32>
    %118 = arith.mulf %116, %116 : vector<1x128xf32>
    %119 = arith.subf %117, %118 : vector<1x128xf32>
    %120 = vector.broadcast %116 : vector<1x128xf32> to vector<16x128xf32>
    %121 = arith.subf %108, %120 : vector<16x128xf32>
    %cst_51 = arith.constant 9.99999993E-9 : f32
    %122 = vector.broadcast %cst_51 : f32 to vector<1x128xf32>
    %123 = arith.addf %119, %122 : vector<1x128xf32>
    %124 = math.rsqrt %123 : vector<1x128xf32>
    %125 = vector.broadcast %124 : vector<1x128xf32> to vector<16x128xf32>
    %126 = arith.mulf %121, %125 : vector<16x128xf32>
    %127 = vector.broadcast %98 : vector<1x128xf32> to vector<16x128xf32>
    %128 = arith.mulf %126, %127 : vector<16x128xf32>
    %129 = vector.broadcast %99 : vector<1x128xf32> to vector<16x128xf32>
    %130 = arith.addf %128, %129 : vector<16x128xf32>
    %cst_52 = arith.constant 0.000000e+00 : f32
    %131 = vector.broadcast %cst_52 : f32 to vector<16x128xf32>
    %132 = arith.maximumf %130, %131 : vector<16x128xf32>
    %c3_53 = arith.constant 3 : index
    %c0_54 = arith.constant 0 : index
    %c0_55 = arith.constant 0 : index
    %133 = vector.load %arg2[%c3_53, %c0_54, %c0_55] : memref<6x256x128xf32, #tpu.memory_space<vmem>>, vector<1x256x128xf32>
    %134 = vector.shape_cast %133 : vector<1x256x128xf32> to vector<256x128xf32>
    %c10 = arith.constant 10 : index
    %c0_56 = arith.constant 0 : index
    %135 = vector.load %arg3[%c10, %c0_56] : memref<23x128xf32, #tpu.memory_space<vmem>>, vector<1x128xf32>
    %c11 = arith.constant 11 : index
    %c0_57 = arith.constant 0 : index
    %136 = vector.load %arg3[%c11, %c0_57] : memref<23x128xf32, #tpu.memory_space<vmem>>, vector<1x128xf32>
    %c12 = arith.constant 12 : index
    %c0_58 = arith.constant 0 : index
    %137 = vector.load %arg3[%c12, %c0_58] : memref<23x128xf32, #tpu.memory_space<vmem>>, vector<1x128xf32>
    %c2_i32_59 = arith.constant 2 : i32
    %138 = vector.broadcast %c2_i32_59 : i32 to vector<16x128xi32>
    %139 = arith.cmpi sge, %2, %138 : vector<16x128xi32>
    %c2_i32_60 = arith.constant 2 : i32
    %140 = tpu.dynamic_rotate %132 by %c2_i32_60 dim 0 : vector<16x128xf32>, i32 -> vector<16x128xf32>
    %cst_61 = arith.constant 0.000000e+00 : f32
    %141 = vector.broadcast %cst_61 : f32 to vector<16x128xf32>
    %142 = arith.select %139, %140, %141 : vector<16x128xi1>, vector<16x128xf32>
    %143 = tpu.concatenate %142, %132 in 1 : vector<16x128xf32>, vector<16x128xf32> -> vector<16x256xf32>
    %cst_62 = arith.constant dense<0.000000e+00> : vector<16x128xf32>
    %144 = tpu.matmul %143, %134, %cst_62 {dimension_numbers = #tpu.dot_dimension_numbers<[1], [0], [0], [1], [0, 0, 1, 1], [], []>} : vector<16x256xf32>, vector<256x128xf32>, vector<16x128xf32> -> vector<16x128xf32>
    %145 = vector.broadcast %135 : vector<1x128xf32> to vector<16x128xf32>
    %146 = arith.addf %144, %145 : vector<16x128xf32>
    %cst_63 = arith.constant dense<0.000000e+00> : vector<128xf32>
    %147 = vector.multi_reduction <add>, %146, %cst_63 [0] : vector<16x128xf32> to vector<128xf32>
    %148 = vector.shape_cast %147 : vector<128xf32> to vector<1x128xf32>
    %149 = arith.mulf %146, %146 : vector<16x128xf32>
    %cst_64 = arith.constant dense<0.000000e+00> : vector<128xf32>
    %150 = vector.multi_reduction <add>, %149, %cst_64 [0] : vector<16x128xf32> to vector<128xf32>
    %151 = vector.shape_cast %150 : vector<128xf32> to vector<1x128xf32>
    %152 = tpu.concatenate %148, %151 in 0 : vector<1x128xf32>, vector<1x128xf32> -> vector<2x128xf32>
    %cst_65 = arith.constant dense<0.000000e+00> : vector<2x128xf32>
    %153 = tpu.matmul %152, %1, %cst_65 {dimension_numbers = #tpu.dot_dimension_numbers<[1], [0], [0], [1], [0, 0, 1, 1], [], []>} : vector<2x128xf32>, vector<128x128xf32>, vector<2x128xf32> -> vector<2x128xf32>
    %154 = vector.extract_strided_slice %153 {offsets = [0, 0], sizes = [1, 128], strides = [1, 1]} : vector<2x128xf32> to vector<1x128xf32>
    %155 = vector.extract_strided_slice %153 {offsets = [1, 0], sizes = [1, 128], strides = [1, 1]} : vector<2x128xf32> to vector<1x128xf32>
    %156 = arith.mulf %154, %154 : vector<1x128xf32>
    %157 = arith.subf %155, %156 : vector<1x128xf32>
    %158 = vector.broadcast %154 : vector<1x128xf32> to vector<16x128xf32>
    %159 = arith.subf %146, %158 : vector<16x128xf32>
    %cst_66 = arith.constant 9.99999993E-9 : f32
    %160 = vector.broadcast %cst_66 : f32 to vector<1x128xf32>
    %161 = arith.addf %157, %160 : vector<1x128xf32>
    %162 = math.rsqrt %161 : vector<1x128xf32>
    %163 = vector.broadcast %162 : vector<1x128xf32> to vector<16x128xf32>
    %164 = arith.mulf %159, %163 : vector<16x128xf32>
    %165 = vector.broadcast %136 : vector<1x128xf32> to vector<16x128xf32>
    %166 = arith.mulf %164, %165 : vector<16x128xf32>
    %167 = vector.broadcast %137 : vector<1x128xf32> to vector<16x128xf32>
    %168 = arith.addf %166, %167 : vector<16x128xf32>
    %cst_67 = arith.constant 0.000000e+00 : f32
    %169 = vector.broadcast %cst_67 : f32 to vector<16x128xf32>
    %170 = arith.maximumf %168, %169 : vector<16x128xf32>
    %171 = arith.negf %170 : vector<16x128xf32>
    %172 = math.exp %171 : vector<16x128xf32>
    %cst_68 = arith.constant 1.000000e+00 : f32
    %173 = vector.broadcast %cst_68 : f32 to vector<16x128xf32>
    %174 = arith.addf %173, %172 : vector<16x128xf32>
    %175 = arith.divf %173, %174 : vector<16x128xf32>
    %176 = arith.mulf %90, %175 : vector<16x128xf32>
    %c20 = arith.constant 20 : index
    %c0_69 = arith.constant 0 : index
    %177 = vector.load %arg3[%c20, %c0_69] : memref<23x128xf32, #tpu.memory_space<vmem>>, vector<1x128xf32>
    %178 = vector.broadcast %177 : vector<1x128xf32> to vector<16x128xf32>
    %179 = arith.mulf %178, %176 : vector<16x128xf32>
    %180 = arith.addf %94, %179 : vector<16x128xf32>
    %c4_70 = arith.constant 4 : index
    %c0_71 = arith.constant 0 : index
    %c0_72 = arith.constant 0 : index
    %181 = vector.load %arg2[%c4_70, %c0_71, %c0_72] : memref<6x256x128xf32, #tpu.memory_space<vmem>>, vector<1x256x128xf32>
    %182 = vector.shape_cast %181 : vector<1x256x128xf32> to vector<256x128xf32>
    %c13 = arith.constant 13 : index
    %c0_73 = arith.constant 0 : index
    %183 = vector.load %arg3[%c13, %c0_73] : memref<23x128xf32, #tpu.memory_space<vmem>>, vector<1x128xf32>
    %c14 = arith.constant 14 : index
    %c0_74 = arith.constant 0 : index
    %184 = vector.load %arg3[%c14, %c0_74] : memref<23x128xf32, #tpu.memory_space<vmem>>, vector<1x128xf32>
    %c15 = arith.constant 15 : index
    %c0_75 = arith.constant 0 : index
    %185 = vector.load %arg3[%c15, %c0_75] : memref<23x128xf32, #tpu.memory_space<vmem>>, vector<1x128xf32>
    %c4_i32 = arith.constant 4 : i32
    %186 = vector.broadcast %c4_i32 : i32 to vector<16x128xi32>
    %187 = arith.cmpi sge, %2, %186 : vector<16x128xi32>
    %c4_i32_76 = arith.constant 4 : i32
    %188 = tpu.dynamic_rotate %176 by %c4_i32_76 dim 0 : vector<16x128xf32>, i32 -> vector<16x128xf32>
    %cst_77 = arith.constant 0.000000e+00 : f32
    %189 = vector.broadcast %cst_77 : f32 to vector<16x128xf32>
    %190 = arith.select %187, %188, %189 : vector<16x128xi1>, vector<16x128xf32>
    %191 = tpu.concatenate %190, %176 in 1 : vector<16x128xf32>, vector<16x128xf32> -> vector<16x256xf32>
    %cst_78 = arith.constant dense<0.000000e+00> : vector<16x128xf32>
    %192 = tpu.matmul %191, %182, %cst_78 {dimension_numbers = #tpu.dot_dimension_numbers<[1], [0], [0], [1], [0, 0, 1, 1], [], []>} : vector<16x256xf32>, vector<256x128xf32>, vector<16x128xf32> -> vector<16x128xf32>
    %193 = vector.broadcast %183 : vector<1x128xf32> to vector<16x128xf32>
    %194 = arith.addf %192, %193 : vector<16x128xf32>
    %cst_79 = arith.constant dense<0.000000e+00> : vector<128xf32>
    %195 = vector.multi_reduction <add>, %194, %cst_79 [0] : vector<16x128xf32> to vector<128xf32>
    %196 = vector.shape_cast %195 : vector<128xf32> to vector<1x128xf32>
    %197 = arith.mulf %194, %194 : vector<16x128xf32>
    %cst_80 = arith.constant dense<0.000000e+00> : vector<128xf32>
    %198 = vector.multi_reduction <add>, %197, %cst_80 [0] : vector<16x128xf32> to vector<128xf32>
    %199 = vector.shape_cast %198 : vector<128xf32> to vector<1x128xf32>
    %200 = tpu.concatenate %196, %199 in 0 : vector<1x128xf32>, vector<1x128xf32> -> vector<2x128xf32>
    %cst_81 = arith.constant dense<0.000000e+00> : vector<2x128xf32>
    %201 = tpu.matmul %200, %1, %cst_81 {dimension_numbers = #tpu.dot_dimension_numbers<[1], [0], [0], [1], [0, 0, 1, 1], [], []>} : vector<2x128xf32>, vector<128x128xf32>, vector<2x128xf32> -> vector<2x128xf32>
    %202 = vector.extract_strided_slice %201 {offsets = [0, 0], sizes = [1, 128], strides = [1, 1]} : vector<2x128xf32> to vector<1x128xf32>
    %203 = vector.extract_strided_slice %201 {offsets = [1, 0], sizes = [1, 128], strides = [1, 1]} : vector<2x128xf32> to vector<1x128xf32>
    %204 = arith.mulf %202, %202 : vector<1x128xf32>
    %205 = arith.subf %203, %204 : vector<1x128xf32>
    %206 = vector.broadcast %202 : vector<1x128xf32> to vector<16x128xf32>
    %207 = arith.subf %194, %206 : vector<16x128xf32>
    %cst_82 = arith.constant 9.99999993E-9 : f32
    %208 = vector.broadcast %cst_82 : f32 to vector<1x128xf32>
    %209 = arith.addf %205, %208 : vector<1x128xf32>
    %210 = math.rsqrt %209 : vector<1x128xf32>
    %211 = vector.broadcast %210 : vector<1x128xf32> to vector<16x128xf32>
    %212 = arith.mulf %207, %211 : vector<16x128xf32>
    %213 = vector.broadcast %184 : vector<1x128xf32> to vector<16x128xf32>
    %214 = arith.mulf %212, %213 : vector<16x128xf32>
    %215 = vector.broadcast %185 : vector<1x128xf32> to vector<16x128xf32>
    %216 = arith.addf %214, %215 : vector<16x128xf32>
    %cst_83 = arith.constant 0.000000e+00 : f32
    %217 = vector.broadcast %cst_83 : f32 to vector<16x128xf32>
    %218 = arith.maximumf %216, %217 : vector<16x128xf32>
    %c5_84 = arith.constant 5 : index
    %c0_85 = arith.constant 0 : index
    %c0_86 = arith.constant 0 : index
    %219 = vector.load %arg2[%c5_84, %c0_85, %c0_86] : memref<6x256x128xf32, #tpu.memory_space<vmem>>, vector<1x256x128xf32>
    %220 = vector.shape_cast %219 : vector<1x256x128xf32> to vector<256x128xf32>
    %c16 = arith.constant 16 : index
    %c0_87 = arith.constant 0 : index
    %221 = vector.load %arg3[%c16, %c0_87] : memref<23x128xf32, #tpu.memory_space<vmem>>, vector<1x128xf32>
    %c17 = arith.constant 17 : index
    %c0_88 = arith.constant 0 : index
    %222 = vector.load %arg3[%c17, %c0_88] : memref<23x128xf32, #tpu.memory_space<vmem>>, vector<1x128xf32>
    %c18 = arith.constant 18 : index
    %c0_89 = arith.constant 0 : index
    %223 = vector.load %arg3[%c18, %c0_89] : memref<23x128xf32, #tpu.memory_space<vmem>>, vector<1x128xf32>
    %c4_i32_90 = arith.constant 4 : i32
    %224 = vector.broadcast %c4_i32_90 : i32 to vector<16x128xi32>
    %225 = arith.cmpi sge, %2, %224 : vector<16x128xi32>
    %c4_i32_91 = arith.constant 4 : i32
    %226 = tpu.dynamic_rotate %218 by %c4_i32_91 dim 0 : vector<16x128xf32>, i32 -> vector<16x128xf32>
    %cst_92 = arith.constant 0.000000e+00 : f32
    %227 = vector.broadcast %cst_92 : f32 to vector<16x128xf32>
    %228 = arith.select %225, %226, %227 : vector<16x128xi1>, vector<16x128xf32>
    %229 = tpu.concatenate %228, %218 in 1 : vector<16x128xf32>, vector<16x128xf32> -> vector<16x256xf32>
    %cst_93 = arith.constant dense<0.000000e+00> : vector<16x128xf32>
    %230 = tpu.matmul %229, %220, %cst_93 {dimension_numbers = #tpu.dot_dimension_numbers<[1], [0], [0], [1], [0, 0, 1, 1], [], []>} : vector<16x256xf32>, vector<256x128xf32>, vector<16x128xf32> -> vector<16x128xf32>
    %231 = vector.broadcast %221 : vector<1x128xf32> to vector<16x128xf32>
    %232 = arith.addf %230, %231 : vector<16x128xf32>
    %cst_94 = arith.constant dense<0.000000e+00> : vector<128xf32>
    %233 = vector.multi_reduction <add>, %232, %cst_94 [0] : vector<16x128xf32> to vector<128xf32>
    %234 = vector.shape_cast %233 : vector<128xf32> to vector<1x128xf32>
    %235 = arith.mulf %232, %232 : vector<16x128xf32>
    %cst_95 = arith.constant dense<0.000000e+00> : vector<128xf32>
    %236 = vector.multi_reduction <add>, %235, %cst_95 [0] : vector<16x128xf32> to vector<128xf32>
    %237 = vector.shape_cast %236 : vector<128xf32> to vector<1x128xf32>
    %238 = tpu.concatenate %234, %237 in 0 : vector<1x128xf32>, vector<1x128xf32> -> vector<2x128xf32>
    %cst_96 = arith.constant dense<0.000000e+00> : vector<2x128xf32>
    %239 = tpu.matmul %238, %1, %cst_96 {dimension_numbers = #tpu.dot_dimension_numbers<[1], [0], [0], [1], [0, 0, 1, 1], [], []>} : vector<2x128xf32>, vector<128x128xf32>, vector<2x128xf32> -> vector<2x128xf32>
    %240 = vector.extract_strided_slice %239 {offsets = [0, 0], sizes = [1, 128], strides = [1, 1]} : vector<2x128xf32> to vector<1x128xf32>
    %241 = vector.extract_strided_slice %239 {offsets = [1, 0], sizes = [1, 128], strides = [1, 1]} : vector<2x128xf32> to vector<1x128xf32>
    %242 = arith.mulf %240, %240 : vector<1x128xf32>
    %243 = arith.subf %241, %242 : vector<1x128xf32>
    %244 = vector.broadcast %240 : vector<1x128xf32> to vector<16x128xf32>
    %245 = arith.subf %232, %244 : vector<16x128xf32>
    %cst_97 = arith.constant 9.99999993E-9 : f32
    %246 = vector.broadcast %cst_97 : f32 to vector<1x128xf32>
    %247 = arith.addf %243, %246 : vector<1x128xf32>
    %248 = math.rsqrt %247 : vector<1x128xf32>
    %249 = vector.broadcast %248 : vector<1x128xf32> to vector<16x128xf32>
    %250 = arith.mulf %245, %249 : vector<16x128xf32>
    %251 = vector.broadcast %222 : vector<1x128xf32> to vector<16x128xf32>
    %252 = arith.mulf %250, %251 : vector<16x128xf32>
    %253 = vector.broadcast %223 : vector<1x128xf32> to vector<16x128xf32>
    %254 = arith.addf %252, %253 : vector<16x128xf32>
    %cst_98 = arith.constant 0.000000e+00 : f32
    %255 = vector.broadcast %cst_98 : f32 to vector<16x128xf32>
    %256 = arith.maximumf %254, %255 : vector<16x128xf32>
    %257 = arith.negf %256 : vector<16x128xf32>
    %258 = math.exp %257 : vector<16x128xf32>
    %cst_99 = arith.constant 1.000000e+00 : f32
    %259 = vector.broadcast %cst_99 : f32 to vector<16x128xf32>
    %260 = arith.addf %259, %258 : vector<16x128xf32>
    %261 = arith.divf %259, %260 : vector<16x128xf32>
    %262 = arith.mulf %176, %261 : vector<16x128xf32>
    %c21 = arith.constant 21 : index
    %c0_100 = arith.constant 0 : index
    %263 = vector.load %arg3[%c21, %c0_100] : memref<23x128xf32, #tpu.memory_space<vmem>>, vector<1x128xf32>
    %264 = vector.broadcast %263 : vector<1x128xf32> to vector<16x128xf32>
    %265 = arith.mulf %264, %262 : vector<16x128xf32>
    %266 = arith.addf %180, %265 : vector<16x128xf32>
    %cst_101 = arith.constant dense<0.000000e+00> : vector<128xf32>
    %267 = vector.multi_reduction <add>, %266, %cst_101 [0] : vector<16x128xf32> to vector<128xf32>
    %268 = vector.shape_cast %267 : vector<128xf32> to vector<1x128xf32>
    %c0_102 = arith.constant 0 : index
    %c0_103 = arith.constant 0 : index
    %269 = vector.load %arg5[%c0_102, %c0_103] : memref<128x64xf32, #tpu.memory_space<vmem>>, vector<128x64xf32>
    %cst_104 = arith.constant dense<0.000000e+00> : vector<1x64xf32>
    %270 = tpu.matmul %268, %269, %cst_104 {dimension_numbers = #tpu.dot_dimension_numbers<[1], [0], [0], [1], [0, 0, 1, 1], [], []>} : vector<1x128xf32>, vector<128x64xf32>, vector<1x64xf32> -> vector<1x64xf32>
    %cst_105 = arith.constant 0.000000e+00 : f32
    %271 = vector.broadcast %cst_105 : f32 to vector<1x64xf32>
    %272 = arith.maximumf %270, %271 : vector<1x64xf32>
    %c22 = arith.constant 22 : index
    %c0_106 = arith.constant 0 : index
    %273 = vector.load %arg3[%c22, %c0_106] : memref<23x128xf32, #tpu.memory_space<vmem>>, vector<1x128xf32>
    %c0_107 = arith.constant 0 : index
    %c0_108 = arith.constant 0 : index
    %274 = vector.load %arg6[%c0_107, %c0_108] : memref<64x8xf32, #tpu.memory_space<vmem>>, vector<64x8xf32>
    %cst_109 = arith.constant dense<0.000000e+00> : vector<1x8xf32>
    %275 = tpu.matmul %272, %274, %cst_109 {dimension_numbers = #tpu.dot_dimension_numbers<[1], [0], [0], [1], [0, 0, 1, 1], [], []>} : vector<1x64xf32>, vector<64x8xf32>, vector<1x8xf32> -> vector<1x8xf32>
    %276 = vector.extract_strided_slice %273 {offsets = [0, 0], sizes = [1, 8], strides = [1, 1]} : vector<1x128xf32> to vector<1x8xf32>
    %277 = arith.addf %275, %276 : vector<1x8xf32>
    %c0_110 = arith.constant 0 : index
    %c0_111 = arith.constant 0 : index
    %278 = vector.load %arg7[%c0_110, %c0_111] : memref<1x8xf32, #tpu.memory_space<vmem>>, vector<1x8xf32>
    tpu.vector_store %arg7[%c0_110, %c0_111], %277 {strides = array<i32>} : memref<1x8xf32, #tpu.memory_space<vmem>>, vector<1x8xf32>,
    return
  }
}

</mosaic_0001>

<llo_original>
// kernel: timnet_forward.1
$region0: #{timnet_forward.1}
  #allocation0 [shape = 'u32[]', space=smem, size = 0x4, offset = 0x4, fixed_abs, tag = 'smem constant byte address 0x4 - core index']
  #allocation1 [shape = 'u32[72,128]{1,0:T(1,128)}', space=vmem, size = 0x9000, scoped, tag = 'internal scratch']
  %s0 = inlined_call_operand.vmem [shape: f32[16,128], index: 0, kind: input, shape index: {}]
  %s1 = inlined_call_operand.vmem [shape: f32[128,128], index: 1, kind: input, shape index: {}]
  %s2 = inlined_call_operand.hbm [shape: f32[6,256,128], index: 2, kind: input, shape index: {}]
  %s3 = inlined_call_operand.vmem [shape: f32[23,128], index: 3, kind: input, shape index: {}]
  %s4 = inlined_call_operand.vmem [shape: f32[128,128], index: 4, kind: input, shape index: {}]
  %s5 = inlined_call_operand.vmem [shape: f32[128,64], index: 5, kind: input, shape index: {}]
  %s6 = inlined_call_operand.vmem [shape: f32[64,8], index: 6, kind: input, shape index: {}]
  %s7 = inlined_call_operand.vmem [shape: f32[1,8], index: 7, kind: output, shape index: {}]
  %s8 = sld [smem:[#allocation0]]
  $region42: #{timnet_forward.1} parent=0
    _
  %s10 = ssub.s32 1, %s8
  %s11 = scalar_select 0, %s10, %s8
  $region1: #{timnet_forward.1} parent=0
    #allocation2 [shape = 'u8[786432]{0}', space=vmem, size = 0xc0000, scoped, tag = 'input window, operand 2, single buffered']
    #allocation3 [shape = 's32[1]{0}', space=sflag, size = 0x4, scoped, tag = 'scoped memory for timnet_forward.1']
    %12 = vsyncpa [#allocation3], 0
    // Predicated region
    $region2: #{timnet_forward.1} parent=1 // pred_check
      _
    $region3: #{timnet_forward.1} parent=1 // pred_check_branch
      %14 = sbr.rel (0) target = $region5
    $region4: #{timnet_forward.1} parent=1 // pred_region
      _
    $region5: #{timnet_forward.1} parent=1 // pred_fallthru
      _
    // Predicated region
    $region6: #{timnet_forward.1} parent=1 // pred_check
      _
    $region7: #{timnet_forward.1} parent=1 // pred_check_branch
      %16 = sbr.rel (0) target = $region9
    $region8: #{timnet_forward.1} parent=1 // pred_region
      _
    $region9: #{timnet_forward.1} parent=1 // pred_fallthru
      _
    // Predicated region
    $region10: #{timnet_forward.1} parent=1 // pred_check
      _
    $region11: #{timnet_forward.1} parent=1 // pred_check_branch
      %18 = sbr.rel (0) target = $region13
    $region12: #{timnet_forward.1} parent=1 // pred_region
      %20 = vsyncadd [#allocation3], 0
      %s21 = sshll.u32 %s2, 4
      %s22 = int_to_ptr.hbm [resolvable:$true] %s21
      %s23 = sshll.u32 [#allocation2], 4
      %s24 = int_to_ptr.vmem [resolvable:$true] %s23
      %29 = dma.hbm_to_vmem [thread:$0]  %s22, 24576, %s24, [#allocation3], 128, 128, 8
    $region13: #{timnet_forward.1} parent=1 // pred_fallthru
      _
    // Predicated region
    $region14: #{timnet_forward.1} parent=1 // pred_check
      _
    $region15: #{timnet_forward.1} parent=1 // pred_check_branch
      %31 = sbr.rel (0) target = $region17
    $region16: #{timnet_forward.1} parent=1 // pred_region
      _
    $region17: #{timnet_forward.1} parent=1 // pred_fallthru
      _
    // Predicated region
    $region18: #{timnet_forward.1} parent=1 // pred_check
      _
    $region19: #{timnet_forward.1} parent=1 // pred_check_branch
      %33 = sbr.rel (0) target = $region21
    $region20: #{timnet_forward.1} parent=1 // pred_region
      _
    $region21: #{timnet_forward.1} parent=1 // pred_fallthru
      _
    // Predicated region
    $region22: #{timnet_forward.1} parent=1 // pred_check
      _
    $region23: #{timnet_forward.1} parent=1 // pred_check_branch
      %35 = sbr.rel (0) target = $region25
    $region24: #{timnet_forward.1} parent=1 // pred_region
      _
    $region25: #{timnet_forward.1} parent=1 // pred_fallthru
      _
    // Predicated region
    $region26: #{timnet_forward.1} parent=1 // pred_check
      _
    $region27: #{timnet_forward.1} parent=1 // pred_check_branch
      %37 = sbr.rel (0) target = $region29
    $region28: #{timnet_forward.1} parent=1 // pred_region
      _
    $region29: #{timnet_forward.1} parent=1 // pred_fallthru
      _
    // Predicated region
    $region30: #{timnet_forward.1} parent=1 // pred_check
      _
    $region31: #{timnet_forward.1} parent=1 // pred_check_branch
      %39 = sbr.rel (0) target = $region33
    $region32: #{timnet_forward.1} parent=1 // pred_region
      %41 = dma.done [#allocation3], 24576
    $region33: #{timnet_forward.1} parent=1 // pred_fallthru
      _
    %v42 = vld [vmem:[%s0] sm:$0xff]
    %v43 = vld [vmem:[%s0 + $0x8] sm:$0xff]
    %v44 = vld [vmem:[%s4] sm:$0xff]
    %v45 = vld [vmem:[%s4 + $0x8] sm:$0xff]
    %v46 = vld [vmem:[%s4 + $0x10] sm:$0xff]
    %v47 = vld [vmem:[%s4 + $0x18] sm:$0xff]
    %v48 = vld [vmem:[%s4 + $0x20] sm:$0xff]
    %v49 = vld [vmem:[%s4 + $0x28] sm:$0xff]
    %v50 = vld [vmem:[%s4 + $0x30] sm:$0xff]
    %v51 = vld [vmem:[%s4 + $0x38] sm:$0xff]
    %v52 = vld [vmem:[%s4 + $0x40] sm:$0xff]
    %v53 = vld [vmem:[%s4 + $0x48] sm:$0xff]
    %v54 = vld [vmem:[%s4 + $0x50] sm:$0xff]
    %v55 = vld [vmem:[%s4 + $0x58] sm:$0xff]
    %v56 = vld [vmem:[%s4 + $0x60] sm:$0xff]
    %v57 = vld [vmem:[%s4 + $0x68] sm:$0xff]
    %v58 = vld [vmem:[%s4 + $0x70] sm:$0xff]
    %v59 = vld [vmem:[%s4 + $0x78] sm:$0xff]
    %v60 = vlaneseq
    %v61 = vshrl.u32 %v60, 7
    %v62 = vadd.s32 %v61, 8
    %v63 = vld [vmem:[%s1] sm:$0xff]
    %v64 = vld [vmem:[%s1 + $0x8] sm:$0xff]
    %v65 = vld [vmem:[%s1 + $0x10] sm:$0xff]
    %v66 = vld [vmem:[%s1 + $0x18] sm:$0xff]
    %v67 = vld [vmem:[%s1 + $0x20] sm:$0xff]
    %v68 = vld [vmem:[%s1 + $0x28] sm:$0xff]
    %v69 = vld [vmem:[%s1 + $0x30] sm:$0xff]
    %v70 = vld [vmem:[%s1 + $0x38] sm:$0xff]
    %v71 = vld [vmem:[%s1 + $0x40] sm:$0xff]
    %v72 = vld [vmem:[%s1 + $0x48] sm:$0xff]
    %v73 = vld [vmem:[%s1 + $0x50] sm:$0xff]
    %v74 = vld [vmem:[%s1 + $0x58] sm:$0xff]
    %v75 = vld [vmem:[%s1 + $0x60] sm:$0xff]
    %v76 = vld [vmem:[%s1 + $0x68] sm:$0xff]
    %v77 = vld [vmem:[%s1 + $0x70] sm:$0xff]
    %v78 = vld [vmem:[%s1 + $0x78] sm:$0xff]
    %v79 = vld [vmem:[%s3] sm:$0x1]
    %v80 = vperm.slane %v79, 0
    %81 = vmatpush.msra.mxu0 %v78
    %82 = vmatpush.msra.mxu0 %v77
    %83 = vmatpush.msra.mxu0 %v76
    %84 = vmatpush.msra.mxu0 %v75
    %85 = vmatpush.msra.mxu0 %v74
    %86 = vmatpush.msra.mxu0 %v73
    %87 = vmatpush.msra.mxu0 %v72
    %88 = vmatpush.msra.mxu0 %v71
    %89 = vmatpush.msra.mxu0 %v70
    %90 = vmatpush.msra.mxu0 %v69
    %91 = vmatpush.msra.mxu0 %v68
    %92 = vmatpush.msra.mxu0 %v67
    %93 = vmatpush.msra.mxu0 %v66
    %94 = vmatpush.msra.mxu0 %v65
    %95 = vmatpush.msra.mxu0 %v64
    %96 = vmatpush.msra.mxu0 %v63
    %97 = vmatmul.f32.gmra.mxu0 %v42
    %v98 = vpop.f32.mrf.mxu0
    %v99 = vadd.f32 %v80, %v98
    %100 = vmatmul.f32.gmra.mxu0 %v43
    %v101 = vpop.f32.mrf.mxu0
    %v102 = vadd.f32 %v80, %v101
    %103 = vdwg.mxu0
    %v104 = vld [vmem:[#allocation2] sm:$0xff]
    %v105 = vld [vmem:[#allocation2 + $0x8] sm:$0xff]
    %v106 = vld [vmem:[#allocation2 + $0x10] sm:$0xff]
    %v107 = vld [vmem:[#allocation2 + $0x18] sm:$0xff]
    %v108 = vld [vmem:[#allocation2 + $0x20] sm:$0xff]
    %v109 = vld [vmem:[#allocation2 + $0x28] sm:$0xff]
    %v110 = vld [vmem:[#allocation2 + $0x30] sm:$0xff]
    %v111 = vld [vmem:[#allocation2 + $0x38] sm:$0xff]
    %v112 = vld [vmem:[#allocation2 + $0x40] sm:$0xff]
    %v113 = vld [vmem:[#allocation2 + $0x48] sm:$0xff]
    %v114 = vld [vmem:[#allocation2 + $0x50] sm:$0xff]
    %v115 = vld [vmem:[#allocation2 + $0x58] sm:$0xff]
    %v116 = vld [vmem:[#allocation2 + $0x60] sm:$0xff]
    %v117 = vld [vmem:[#allocation2 + $0x68] sm:$0xff]
    %v118 = vld [vmem:[#allocation2 + $0x70] sm:$0xff]
    %v119 = vld [vmem:[#allocation2 + $0x78] sm:$0xff]
    %v120 = vld [vmem:[#allocation2 + $0x80] sm:$0xff]
    %v121 = vld [vmem:[#allocation2 + $0x88] sm:$0xff]
    %v122 = vld [vmem:[#allocation2 + $0x90] sm:$0xff]
    %v123 = vld [vmem:[#allocation2 + $0x98] sm:$0xff]
    %v124 = vld [vmem:[#allocation2 + $0xa0] sm:$0xff]
    %v125 = vld [vmem:[#allocation2 + $0xa8] sm:$0xff]
    %v126 = vld [vmem:[#allocation2 + $0xb0] sm:$0xff]
    %v127 = vld [vmem:[#allocation2 + $0xb8] sm:$0xff]
    %v128 = vld [vmem:[#allocation2 + $0xc0] sm:$0xff]
    %v129 = vld [vmem:[#allocation2 + $0xc8] sm:$0xff]
    %v130 = vld [vmem:[#allocation2 + $0xd0] sm:$0xff]
    %v131 = vld [vmem:[#allocation2 + $0xd8] sm:$0xff]
    %v132 = vld [vmem:[#allocation2 + $0xe0] sm:$0xff]
    %v133 = vld [vmem:[#allocation2 + $0xe8] sm:$0xff]
    %v134 = vld [vmem:[#allocation2 + $0xf0] sm:$0xff]
    %v135 = vld [vmem:[#allocation2 + $0xf8] sm:$0xff]
    %v136 = vld [vmem:[%s3 + $0x1] sm:$0x1]
    %v137 = vld [vmem:[%s3 + $0x2] sm:$0x1]
    %v138 = vld [vmem:[%s3 + $0x3] sm:$0x1]
    %vm139 = vcmp.ge.s32.totalorder %v61, 1
    %vm140 = vcmp.ge.s32.totalorder %v62, 1
    %v141 = vrot.slane %v99, 7
    %v142 = vrot.slane %v102, 7
    %vm143 = vcmp.lt.s32.totalorder %v61, 1
    %v144 = vsel %vm143, %v141, %v142
    %v145 = vsel %vm143, %v142, %v141
    %v146 = vsel %vm139, %v145, 0.0
    %v147 = vsel %vm140, %v144, 0.0
    %v148 = vperm.slane %v136, 0
    %149 = vmatpush.msra.mxu0 %v119
    %150 = vmatpush.msra.mxu0 %v118
    %151 = vmatpush.msra.mxu0 %v117
    %152 = vmatpush.msra.mxu0 %v116
    %153 = vmatpush.msra.mxu0 %v115
    %154 = vmatpush.msra.mxu0 %v114
    %155 = vmatpush.msra.mxu0 %v113
    %156 = vmatpush.msra.mxu0 %v112
    %157 = vmatpush.msra.mxu0 %v111
    %158 = vmatpush.msra.mxu0 %v110
    %159 = vmatpush.msra.mxu0 %v109
    %160 = vmatpush.msra.mxu0 %v108
    %161 = vmatpush.msra.mxu0 %v107
    %162 = vmatpush.msra.mxu0 %v106
    %163 = vmatpush.msra.mxu0 %v105
    %164 = vmatpush.msra.mxu0 %v104
    %165 = vmatmul.f32.gmra.mxu0 %v146
    %v166 = vpop.f32.mrf.mxu0
    %v167 = vadd.f32 %v148, %v166
    %168 = vmatmul.f32.gmra.mxu0 %v147
    %v169 = vpop.f32.mrf.mxu0
    %v170 = vadd.f32 %v148, %v169
    %171 = vdwg.mxu0
    %172 = vmatpush.msra.mxu0 %v135
    %173 = vmatpush.msra.mxu0 %v134
    %174 = vmatpush.msra.mxu0 %v133
    %175 = vmatpush.msra.mxu0 %v132
    %176 = vmatpush.msra.mxu0 %v131
    %177 = vmatpush.msra.mxu0 %v130
    %178 = vmatpush.msra.mxu0 %v129
    %179 = vmatpush.msra.mxu0 %v128
    %180 = vmatpush.msra.mxu0 %v127
    %181 = vmatpush.msra.mxu0 %v126
    %182 = vmatpush.msra.mxu0 %v125
    %183 = vmatpush.msra.mxu0 %v124
    %184 = vmatpush.msra.mxu0 %v123
    %185 = vmatpush.msra.mxu0 %v122
    %186 = vmatpush.msra.mxu0 %v121
    %187 = vmatpush.msra.mxu0 %v120
    %188 = vmatmul.f32.gmra.mxu0 %v99
    %v189 = vpop.f32.mrf.mxu0
    %v190 = vadd.f32 %v167, %v189
    %191 = vmatmul.f32.gmra.mxu0 %v102
    %v192 = vpop.f32.mrf.mxu0
    %v193 = vadd.f32 %v170, %v192
    %194 = vdwg.mxu0
    %v195 = vadd.f32 %v190, %v193
    %v196 = vrot.slane %v195, 4
    %v197 = vadd.f32 %v195, %v196
    %v198 = vrot.slane %v197, 2
    %v199 = vadd.f32 %v197, %v198
    %v200 = vrot.slane %v199, 1
    %v201 = vadd.f32 %v199, %v200
    %v202 = vmul.f32 %v190, %v190
    %v203 = vmul.f32 %v193, %v193
    %v204 = vadd.f32 %v202, %v203
    %v205 = vrot.slane %v204, 4
    %v206 = vadd.f32 %v204, %v205
    %v207 = vrot.slane %v206, 2
    %v208 = vadd.f32 %v206, %v207
    %v209 = vrot.slane %v208, 1
    %v210 = vadd.f32 %v208, %v209
    %vm211 = vcmask 1040384
    %v212 = vsel %vm211, %v201, %v210
    %213 = vmatpush.msra.mxu0 %v59
    %214 = vmatpush.msra.mxu0 %v58
    %215 = vmatpush.msra.mxu0 %v57
    %216 = vmatpush.msra.mxu0 %v56
    %217 = vmatpush.msra.mxu0 %v55
    %218 = vmatpush.msra.mxu0 %v54
    %219 = vmatpush.msra.mxu0 %v53
    %220 = vmatpush.msra.mxu0 %v52
    %221 = vmatpush.msra.mxu0 %v51
    %222 = vmatpush.msra.mxu0 %v50
    %223 = vmatpush.msra.mxu0 %v49
    %224 = vmatpush.msra.mxu0 %v48
    %225 = vmatpush.msra.mxu0 %v47
    %226 = vmatpush.msra.mxu0 %v46
    %227 = vmatpush.msra.mxu0 %v45
    %228 = vmatpush.msra.mxu0 %v44
    %229 = vmatmul.f32.gmra.mxu0 %v212
    %v230 = vpop.f32.mrf.mxu0
    %v231 = vadd.f32 0.0, %v230
    %232 = vdwg.mxu0
    %v233 = vmul.f32 %v231, %v231
    %v235 = vrot.slane %v233, 7
    %v237 = vsub.f32 %v231, %v235
    %v238 = vperm.slane %v231, 0
    %v239 = vsub.f32 %v190, %v238
    %v240 = vsub.f32 %v193, %v238
    %v241 = vadd.f32 %v237, 1e-08
    %v242 = vrsqrt.pop %v241
    %v243 = vmul.f32 %v242, %v241
    %v244 = vmul.f32 %v243, %v242
    %v245 = vmul.f32 0.5, %v244
    %v246 = vsub.f32 1.5, %v245
    %v247 = vmul.f32 %v242, %v246
    %vm248 = vweird.f32 %v241
    %vm249 = vweird.f32 %v242
    %vm250 = vmor %vm248, %vm249
    %v251 = vsel %vm250, %v242, %v247
    %v252 = vperm.slane %v251, 1
    %v253 = vmul.f32 %v239, %v252
    %v254 = vmul.f32 %v240, %v252
    %v255 = vperm.slane %v137, 0
    %v256 = vmul.f32 %v253, %v255
    %v257 = vmul.f32 %v254, %v255
    %v258 = vperm.slane %v138, 0
    %v259 = vadd.f32 %v256, %v258
    %v260 = vadd.f32 %v257, %v258
    %v261 = vmax.f32 %v259, 0.0
    %v262 = vmax.f32 %v260, 0.0
    %s263 = scalar_lea.vmem [#allocation2], 256
    %v264 = vld [vmem:[%s263] sm:$0xff]
    %v265 = vld [vmem:[%s263 + $0x8] sm:$0xff]
    %v266 = vld [vmem:[%s263 + $0x10] sm:$0xff]
    %v267 = vld [vmem:[%s263 + $0x18] sm:$0xff]
    %v268 = vld [vmem:[%s263 + $0x20] sm:$0xff]
    %v269 = vld [vmem:[%s263 + $0x28] sm:$0xff]
    %v270 = vld [vmem:[%s263 + $0x30] sm:$0xff]
    %v271 = vld [vmem:[%s263 + $0x38] sm:$0xff]
    %v272 = vld [vmem:[%s263 + $0x40] sm:$0xff]
    %v273 = vld [vmem:[%s263 + $0x48] sm:$0xff]
    %v274 = vld [vmem:[%s263 + $0x50] sm:$0xff]
    %v275 = vld [vmem:[%s263 + $0x58] sm:$0xff]
    %v276 = vld [vmem:[%s263 + $0x60] sm:$0xff]
    %v277 = vld [vmem:[%s263 + $0x68] sm:$0xff]
    %v278 = vld [vmem:[%s263 + $0x70] sm:$0xff]
    %v279 = vld [vmem:[%s263 + $0x78] sm:$0xff]
    %v280 = vld [vmem:[%s263 + $0x80] sm:$0xff]
    %v281 = vld [vmem:[%s263 + $0x88] sm:$0xff]
    %v282 = vld [vmem:[%s263 + $0x90] sm:$0xff]
    %v283 = vld [vmem:[%s263 + $0x98] sm:$0xff]
    %v284 = vld [vmem:[%s263 + $0xa0] sm:$0xff]
    %v285 = vld [vmem:[%s263 + $0xa8] sm:$0xff]
    %v286 = vld [vmem:[%s263 + $0xb0] sm:$0xff]
    %v287 = vld [vmem:[%s263 + $0xb8] sm:$0xff]
    %v288 = vld [vmem:[%s263 + $0xc0] sm:$0xff]
    %v289 = vld [vmem:[%s263 + $0xc8] sm:$0xff]
    %v290 = vld [vmem:[%s263 + $0xd0] sm:$0xff]
    %v291 = vld [vmem:[%s263 + $0xd8] sm:$0xff]
    %v292 = vld [vmem:[%s263 + $0xe0] sm:$0xff]
    %v293 = vld [vmem:[%s263 + $0xe8] sm:$0xff]
    %v294 = vld [vmem:[%s263 + $0xf0] sm:$0xff]
    %v295 = vld [vmem:[%s263 + $0xf8] sm:$0xff]
    %v296 = vld [vmem:[%s3 + $0x4] sm:$0x1]
    %v297 = vld [vmem:[%s3 + $0x5] sm:$0x1]
    %v298 = vld [vmem:[%s3 + $0x6] sm:$0x1]
    %v299 = vrot.slane %v261, 7
    %v300 = vrot.slane %v262, 7
    %v301 = vsel %vm143, %v299, %v300
    %v302 = vsel %vm143, %v300, %v299
    %v303 = vsel %vm139, %v302, 0.0
    %v304 = vsel %vm140, %v301, 0.0
    %v305 = vperm.slane %v296, 0
    %306 = vmatpush.msra.mxu0 %v279
    %307 = vmatpush.msra.mxu0 %v278
    %308 = vmatpush.msra.mxu0 %v277
    %309 = vmatpush.msra.mxu0 %v276
    %310 = vmatpush.msra.mxu0 %v275
    %311 = vmatpush.msra.mxu0 %v274
    %312 = vmatpush.msra.mxu0 %v273
    %313 = vmatpush.msra.mxu0 %v272
    %314 = vmatpush.msra.mxu0 %v271
    %315 = vmatpush.msra.mxu0 %v270
    %316 = vmatpush.msra.mxu0 %v269
    %317 = vmatpush.msra.mxu0 %v268
    %318 = vmatpush.msra.mxu0 %v267
    %319 = vmatpush.msra.mxu0 %v266
    %320 = vmatpush.msra.mxu0 %v265
    %321 = vmatpush.msra.mxu0 %v264
    %322 = vmatmul.f32.gmra.mxu0 %v303
    %v323 = vpop.f32.mrf.mxu0
    %v324 = vadd.f32 %v305, %v323
    %325 = vmatmul.f32.gmra.mxu0 %v304
    %v326 = vpop.f32.mrf.mxu0
    %v327 = vadd.f32 %v305, %v326
    %328 = vdwg.mxu0
    %329 = vmatpush.msra.mxu0 %v295
    %330 = vmatpush.msra.mxu0 %v294
    %331 = vmatpush.msra.mxu0 %v293
    %332 = vmatpush.msra.mxu0 %v292
    %333 = vmatpush.msra.mxu0 %v291
    %334 = vmatpush.msra.mxu0 %v290
    %335 = vmatpush.msra.mxu0 %v289
    %336 = vmatpush.msra.mxu0 %v288
    %337 = vmatpush.msra.mxu0 %v287
    %338 = vmatpush.msra.mxu0 %v286
    %339 = vmatpush.msra.mxu0 %v285
    %340 = vmatpush.msra.mxu0 %v284
    %341 = vmatpush.msra.mxu0 %v283
    %342 = vmatpush.msra.mxu0 %v282
    %343 = vmatpush.msra.mxu0 %v281
    %344 = vmatpush.msra.mxu0 %v280
    %345 = vmatmul.f32.gmra.mxu0 %v261
    %v346 = vpop.f32.mrf.mxu0
    %v347 = vadd.f32 %v324, %v346
    %348 = vmatmul.f32.gmra.mxu0 %v262
    %v349 = vpop.f32.mrf.mxu0
    %v350 = vadd.f32 %v327, %v349
    %351 = vdwg.mxu0
    %v352 = vadd.f32 %v347, %v350
    %v353 = vrot.slane %v352, 4
    %v354 = vadd.f32 %v352, %v353
    %v355 = vrot.slane %v354, 2
    %v356 = vadd.f32 %v354, %v355
    %v357 = vrot.slane %v356, 1
    %v358 = vadd.f32 %v356, %v357
    %v359 = vmul.f32 %v347, %v347
    %v360 = vmul.f32 %v350, %v350
    %v361 = vadd.f32 %v359, %v360
    %v362 = vrot.slane %v361, 4
    %v363 = vadd.f32 %v361, %v362
    %v364 = vrot.slane %v363, 2
    %v365 = vadd.f32 %v363, %v364
    %v366 = vrot.slane %v365, 1
    %v367 = vadd.f32 %v365, %v366
    %v368 = vsel %vm211, %v358, %v367
    %369 = vmatpush.msra.mxu0 %v59
    %370 = vmatpush.msra.mxu0 %v58
    %371 = vmatpush.msra.mxu0 %v57
    %372 = vmatpush.msra.mxu0 %v56
    %373 = vmatpush.msra.mxu0 %v55
    %374 = vmatpush.msra.mxu0 %v54
    %375 = vmatpush.msra.mxu0 %v53
    %376 = vmatpush.msra.mxu0 %v52
    %377 = vmatpush.msra.mxu0 %v51
    %378 = vmatpush.msra.mxu0 %v50
    %379 = vmatpush.msra.mxu0 %v49
    %380 = vmatpush.msra.mxu0 %v48
    %381 = vmatpush.msra.mxu0 %v47
    %382 = vmatpush.msra.mxu0 %v46
    %383 = vmatpush.msra.mxu0 %v45
    %384 = vmatpush.msra.mxu0 %v44
    %385 = vmatmul.f32.gmra.mxu0 %v368
    %v386 = vpop.f32.mrf.mxu0
    %v387 = vadd.f32 0.0, %v386
    %388 = vdwg.mxu0
    %v389 = vmul.f32 %v387, %v387
    %v391 = vrot.slane %v389, 7
    %v393 = vsub.f32 %v387, %v391
    %v394 = vperm.slane %v387, 0
    %v395 = vsub.f32 %v347, %v394
    %v396 = vsub.f32 %v350, %v394
    %v397 = vadd.f32 %v393, 1e-08
    %v398 = vrsqrt.pop %v397
    %v399 = vmul.f32 %v398, %v397
    %v400 = vmul.f32 %v399, %v398
    %v401 = vmul.f32 0.5, %v400
    %v402 = vsub.f32 1.5, %v401
    %v403 = vmul.f32 %v398, %v402
    %vm404 = vweird.f32 %v397
    %vm405 = vweird.f32 %v398
    %vm406 = vmor %vm404, %vm405
    %v407 = vsel %vm406, %v398, %v403
    %v408 = vperm.slane %v407, 1
    %v409 = vmul.f32 %v395, %v408
    %v410 = vmul.f32 %v396, %v408
    %v411 = vperm.slane %v297, 0
    %v412 = vmul.f32 %v409, %v411
    %v413 = vmul.f32 %v410, %v411
    %v414 = vperm.slane %v298, 0
    %v415 = vadd.f32 %v412, %v414
    %v416 = vadd.f32 %v413, %v414
    %v417 = vmax.f32 %v415, 0.0
    %v418 = vmax.f32 %v416, 0.0
    %v419 = vxor.u32 %v417, 2147483648
    %v420 = vxor.u32 %v418, 2147483648
    %v421 = vmul.f32 %v419, 1.442695
    %v422 = vpow.pop %v421
    %v423 = vmul.f32 %v420, 1.442695
    %v424 = vpow.pop %v423
    %v425 = vadd.f32 %v422, 1.0
    %v426 = vadd.f32 %v424, 1.0
    %v427 = vrcp.pop %v425
    %v428 = vmul.f32 %v425, %v427
    %v429 = vsub.f32 1.0, %v428
    %v430 = vmul.f32 %v427, %v429
    %v431 = vadd.f32 %v427, %v430
    %vm432 = vweird.f32 %v425
    %vm433 = vweird.f32 %v427
    %vm434 = vmor %vm432, %vm433
    %v435 = vsel %vm434, %v427, %v431
    %v436 = vand.u32 2147483647, %v425
    %vm437 = vcmp.eq.f32.partialorder %v436, 8.507059e+37
    %v438 = vand.u32 %v425, 2147483648
    %v439 = vor.u32 1.1754944e-38, %v438
    %v440 = vsel %vm437, %v439, %v435
    %v441 = vmul.f32 1.0, %v440
    %v442 = vrcp.pop %v426
    %v443 = vmul.f32 %v426, %v442
    %v444 = vsub.f32 1.0, %v443
    %v445 = vmul.f32 %v442, %v444
    %v446 = vadd.f32 %v442, %v445
    %vm447 = vweird.f32 %v426
    %vm448 = vweird.f32 %v442
    %vm449 = vmor %vm447, %vm448
    %v450 = vsel %vm449, %v442, %v446
    %v451 = vand.u32 2147483647, %v426
    %vm452 = vcmp.eq.f32.partialorder %v451, 8.507059e+37
    %v453 = vand.u32 %v426, 2147483648
    %v454 = vor.u32 1.1754944e-38, %v453
    %v455 = vsel %vm452, %v454, %v450
    %v456 = vmul.f32 1.0, %v455
    %v457 = vmul.f32 %v99, %v441
    %v458 = vmul.f32 %v102, %v456
    %v459 = vld [vmem:[%s3 + $0x13] sm:$0x1]
    %v460 = vperm.slane %v459, 0
    %v461 = vmul.f32 %v460, %v457
    %v462 = vmul.f32 %v460, %v458
    %v463 = vadd.f32 %v461, 0.0
    %v464 = vadd.f32 %v462, 0.0
    %s465 = scalar_lea.vmem [#allocation2], 512
    %v466 = vld [vmem:[%s465] sm:$0xff]
    %v467 = vld [vmem:[%s465 + $0x8] sm:$0xff]
    %v468 = vld [vmem:[%s465 + $0x10] sm:$0xff]
    %v469 = vld [vmem:[%s465 + $0x18] sm:$0xff]
    %v470 = vld [vmem:[%s465 + $0x20] sm:$0xff]
    %v471 = vld [vmem:[%s465 + $0x28] sm:$0xff]
    %v472 = vld [vmem:[%s465 + $0x30] sm:$0xff]
    %v473 = vld [vmem:[%s465 + $0x38] sm:$0xff]
    %v474 = vld [vmem:[%s465 + $0x40] sm:$0xff]
    %v475 = vld [vmem:[%s465 + $0x48] sm:$0xff]
    %v476 = vld [vmem:[%s465 + $0x50] sm:$0xff]
    %v477 = vld [vmem:[%s465 + $0x58] sm:$0xff]
    %v478 = vld [vmem:[%s465 + $0x60] sm:$0xff]
    %v479 = vld [vmem:[%s465 + $0x68] sm:$0xff]
    %v480 = vld [vmem:[%s465 + $0x70] sm:$0xff]
    %v481 = vld [vmem:[%s465 + $0x78] sm:$0xff]
    %v482 = vld [vmem:[%s465 + $0x80] sm:$0xff]
    %v483 = vld [vmem:[%s465 + $0x88] sm:$0xff]
    %v484 = vld [vmem:[%s465 + $0x90] sm:$0xff]
    %v485 = vld [vmem:[%s465 + $0x98] sm:$0xff]
    %v486 = vld [vmem:[%s465 + $0xa0] sm:$0xff]
    %v487 = vld [vmem:[%s465 + $0xa8] sm:$0xff]
    %v488 = vld [vmem:[%s465 + $0xb0] sm:$0xff]
    %v489 = vld [vmem:[%s465 + $0xb8] sm:$0xff]
    %v490 = vld [vmem:[%s465 + $0xc0] sm:$0xff]
    %v491 = vld [vmem:[%s465 + $0xc8] sm:$0xff]
    %v492 = vld [vmem:[%s465 + $0xd0] sm:$0xff]
    %v493 = vld [vmem:[%s465 + $0xd8] sm:$0xff]
    %v494 = vld [vmem:[%s465 + $0xe0] sm:$0xff]
    %v495 = vld [vmem:[%s465 + $0xe8] sm:$0xff]
    %v496 = vld [vmem:[%s465 + $0xf0] sm:$0xff]
    %v497 = vld [vmem:[%s465 + $0xf8] sm:$0xff]
    %v498 = vld [vmem:[%s3 + $0x7] sm:$0x1]
    %v499 = vld [vmem:[%s3 + $0x8] sm:$0x1]
    %v500 = vld [vmem:[%s3 + $0x9] sm:$0x1]
    %vm501 = vcmp.ge.s32.totalorder %v61, 2
    %vm502 = vcmp.ge.s32.totalorder %v62, 2
    %v503 = vrot.slane %v457, 6
    %v504 = vrot.slane %v458, 6
    %vm505 = vcmp.lt.s32.totalorder %v61, 2
    %v506 = vsel %vm505, %v503, %v504
    %v507 = vsel %vm505, %v504, %v503
    %v508 = vsel %vm501, %v507, 0.0
    %v509 = vsel %vm502, %v506, 0.0
    %v510 = vperm.slane %v498, 0
    %511 = vmatpush.msra.mxu0 %v481
    %512 = vmatpush.msra.mxu0 %v480
    %513 = vmatpush.msra.mxu0 %v479
    %514 = vmatpush.msra.mxu0 %v478
    %515 = vmatpush.msra.mxu0 %v477
    %516 = vmatpush.msra.mxu0 %v476
    %517 = vmatpush.msra.mxu0 %v475
    %518 = vmatpush.msra.mxu0 %v474
    %519 = vmatpush.msra.mxu0 %v473
    %520 = vmatpush.msra.mxu0 %v472
    %521 = vmatpush.msra.mxu0 %v471
    %522 = vmatpush.msra.mxu0 %v470
    %523 = vmatpush.msra.mxu0 %v469
    %524 = vmatpush.msra.mxu0 %v468
    %525 = vmatpush.msra.mxu0 %v467
    %526 = vmatpush.msra.mxu0 %v466
    %527 = vmatmul.f32.gmra.mxu0 %v508
    %v528 = vpop.f32.mrf.mxu0
    %v529 = vadd.f32 %v510, %v528
    %530 = vmatmul.f32.gmra.mxu0 %v509
    %v531 = vpop.f32.mrf.mxu0
    %v532 = vadd.f32 %v510, %v531
    %533 = vdwg.mxu0
    %534 = vmatpush.msra.mxu0 %v497
    %535 = vmatpush.msra.mxu0 %v496
    %536 = vmatpush.msra.mxu0 %v495
    %537 = vmatpush.msra.mxu0 %v494
    %538 = vmatpush.msra.mxu0 %v493
    %539 = vmatpush.msra.mxu0 %v492
    %540 = vmatpush.msra.mxu0 %v491
    %541 = vmatpush.msra.mxu0 %v490
    %542 = vmatpush.msra.mxu0 %v489
    %543 = vmatpush.msra.mxu0 %v488
    %544 = vmatpush.msra.mxu0 %v487
    %545 = vmatpush.msra.mxu0 %v486
    %546 = vmatpush.msra.mxu0 %v485
    %547 = vmatpush.msra.mxu0 %v484
    %548 = vmatpush.msra.mxu0 %v483
    %549 = vmatpush.msra.mxu0 %v482
    %550 = vmatmul.f32.gmra.mxu0 %v457
    %v551 = vpop.f32.mrf.mxu0
    %v552 = vadd.f32 %v529, %v551
    %553 = vmatmul.f32.gmra.mxu0 %v458
    %v554 = vpop.f32.mrf.mxu0
    %v555 = vadd.f32 %v532, %v554
    %556 = vdwg.mxu0
    %v557 = vadd.f32 %v552, %v555
    %v558 = vrot.slane %v557, 4
    %v559 = vadd.f32 %v557, %v558
    %v560 = vrot.slane %v559, 2
    %v561 = vadd.f32 %v559, %v560
    %v562 = vrot.slane %v561, 1
    %v563 = vadd.f32 %v561, %v562
    %v564 = vmul.f32 %v552, %v552
    %v565 = vmul.f32 %v555, %v555
    %v566 = vadd.f32 %v564, %v565
    %v567 = vrot.slane %v566, 4
    %v568 = vadd.f32 %v566, %v567
    %v569 = vrot.slane %v568, 2
    %v570 = vadd.f32 %v568, %v569
    %v571 = vrot.slane %v570, 1
    %v572 = vadd.f32 %v570, %v571
    %v573 = vsel %vm211, %v563, %v572
    %574 = vmatpush.msra.mxu0 %v59
    %575 = vmatpush.msra.mxu0 %v58
    %576 = vmatpush.msra.mxu0 %v57
    %577 = vmatpush.msra.mxu0 %v56
    %578 = vmatpush.msra.mxu0 %v55
    %579 = vmatpush.msra.mxu0 %v54
    %580 = vmatpush.msra.mxu0 %v53
    %581 = vmatpush.msra.mxu0 %v52
    %582 = vmatpush.msra.mxu0 %v51
    %583 = vmatpush.msra.mxu0 %v50
    %584 = vmatpush.msra.mxu0 %v49
    %585 = vmatpush.msra.mxu0 %v48
    %586 = vmatpush.msra.mxu0 %v47
    %587 = vmatpush.msra.mxu0 %v46
    %588 = vmatpush.msra.mxu0 %v45
    %589 = vmatpush.msra.mxu0 %v44
    %590 = vmatmul.f32.gmra.mxu0 %v573
    %v591 = vpop.f32.mrf.mxu0
    %v592 = vadd.f32 0.0, %v591
    %593 = vdwg.mxu0
    %v594 = vmul.f32 %v592, %v592
    %v596 = vrot.slane %v594, 7
    %v598 = vsub.f32 %v592, %v596
    %v599 = vperm.slane %v592, 0
    %v600 = vsub.f32 %v552, %v599
    %v601 = vsub.f32 %v555, %v599
    %v602 = vadd.f32 %v598, 1e-08
    %v603 = vrsqrt.pop %v602
    %v604 = vmul.f32 %v603, %v602
    %v605 = vmul.f32 %v604, %v603
    %v606 = vmul.f32 0.5, %v605
    %v607 = vsub.f32 1.5, %v606
    %v608 = vmul.f32 %v603, %v607
    %vm609 = vweird.f32 %v602
    %vm610 = vweird.f32 %v603
    %vm611 = vmor %vm609, %vm610
    %v612 = vsel %vm611, %v603, %v608
    %v613 = vperm.slane %v612, 1
    %v614 = vmul.f32 %v600, %v613
    %v615 = vmul.f32 %v601, %v613
    %v616 = vperm.slane %v499, 0
    %v617 = vmul.f32 %v614, %v616
    %v618 = vmul.f32 %v615, %v616
    %v619 = vperm.slane %v500, 0
    %v620 = vadd.f32 %v617, %v619
    %v621 = vadd.f32 %v618, %v619
    %v622 = vmax.f32 %v620, 0.0
    %v623 = vmax.f32 %v621, 0.0
    %s624 = scalar_lea.vmem [#allocation2], 768
    %v625 = vld [vmem:[%s624] sm:$0xff]
    %v626 = vld [vmem:[%s624 + $0x8] sm:$0xff]
    %v627 = vld [vmem:[%s624 + $0x10] sm:$0xff]
    %v628 = vld [vmem:[%s624 + $0x18] sm:$0xff]
    %v629 = vld [vmem:[%s624 + $0x20] sm:$0xff]
    %v630 = vld [vmem:[%s624 + $0x28] sm:$0xff]
    %v631 = vld [vmem:[%s624 + $0x30] sm:$0xff]
    %v632 = vld [vmem:[%s624 + $0x38] sm:$0xff]
    %v633 = vld [vmem:[%s624 + $0x40] sm:$0xff]
    %v634 = vld [vmem:[%s624 + $0x48] sm:$0xff]
    %v635 = vld [vmem:[%s624 + $0x50] sm:$0xff]
    %v636 = vld [vmem:[%s624 + $0x58] sm:$0xff]
    %v637 = vld [vmem:[%s624 + $0x60] sm:$0xff]
    %v638 = vld [vmem:[%s624 + $0x68] sm:$0xff]
    %v639 = vld [vmem:[%s624 + $0x70] sm:$0xff]
    %v640 = vld [vmem:[%s624 + $0x78] sm:$0xff]
    %v641 = vld [vmem:[%s624 + $0x80] sm:$0xff]
    %v642 = vld [vmem:[%s624 + $0x88] sm:$0xff]
    %v643 = vld [vmem:[%s624 + $0x90] sm:$0xff]
    %v644 = vld [vmem:[%s624 + $0x98] sm:$0xff]
    %v645 = vld [vmem:[%s624 + $0xa0] sm:$0xff]
    %v646 = vld [vmem:[%s624 + $0xa8] sm:$0xff]
    %v647 = vld [vmem:[%s624 + $0xb0] sm:$0xff]
    %v648 = vld [vmem:[%s624 + $0xb8] sm:$0xff]
    %v649 = vld [vmem:[%s624 + $0xc0] sm:$0xff]
    %v650 = vld [vmem:[%s624 + $0xc8] sm:$0xff]
    %v651 = vld [vmem:[%s624 + $0xd0] sm:$0xff]
    %v652 = vld [vmem:[%s624 + $0xd8] sm:$0xff]
    %v653 = vld [vmem:[%s624 + $0xe0] sm:$0xff]
    %v654 = vld [vmem:[%s624 + $0xe8] sm:$0xff]
    %v655 = vld [vmem:[%s624 + $0xf0] sm:$0xff]
    %v656 = vld [vmem:[%s624 + $0xf8] sm:$0xff]
    %v657 = vld [vmem:[%s3 + $0xa] sm:$0x1]
    %v658 = vld [vmem:[%s3 + $0xb] sm:$0x1]
    %v659 = vld [vmem:[%s3 + $0xc] sm:$0x1]
    %v660 = vrot.slane %v622, 6
    %v661 = vrot.slane %v623, 6
    %v662 = vsel %vm505, %v660, %v661
    %v663 = vsel %vm505, %v661, %v660
    %v664 = vsel %vm501, %v663, 0.0
    %v665 = vsel %vm502, %v662, 0.0
    %v666 = vperm.slane %v657, 0
    %667 = vmatpush.msra.mxu0 %v640
    %668 = vmatpush.msra.mxu0 %v639
    %669 = vmatpush.msra.mxu0 %v638
    %670 = vmatpush.msra.mxu0 %v637
    %671 = vmatpush.msra.mxu0 %v636
    %672 = vmatpush.msra.mxu0 %v635
    %673 = vmatpush.msra.mxu0 %v634
    %674 = vmatpush.msra.mxu0 %v633
    %675 = vmatpush.msra.mxu0 %v632
    %676 = vmatpush.msra.mxu0 %v631
    %677 = vmatpush.msra.mxu0 %v630
    %678 = vmatpush.msra.mxu0 %v629
    %679 = vmatpush.msra.mxu0 %v628
    %680 = vmatpush.msra.mxu0 %v627
    %681 = vmatpush.msra.mxu0 %v626
    %682 = vmatpush.msra.mxu0 %v625
    %683 = vmatmul.f32.gmra.mxu0 %v664
    %v684 = vpop.f32.mrf.mxu0
    %v685 = vadd.f32 %v666, %v684
    %686 = vmatmul.f32.gmra.mxu0 %v665
    %v687 = vpop.f32.mrf.mxu0
    %v688 = vadd.f32 %v666, %v687
    %689 = vdwg.mxu0
    %690 = vmatpush.msra.mxu0 %v656
    %691 = vmatpush.msra.mxu0 %v655
    %692 = vmatpush.msra.mxu0 %v654
    %693 = vmatpush.msra.mxu0 %v653
    %694 = vmatpush.msra.mxu0 %v652
    %695 = vmatpush.msra.mxu0 %v651
    %696 = vmatpush.msra.mxu0 %v650
    %697 = vmatpush.msra.mxu0 %v649
    %698 = vmatpush.msra.mxu0 %v648
    %699 = vmatpush.msra.mxu0 %v647
    %700 = vmatpush.msra.mxu0 %v646
    %701 = vmatpush.msra.mxu0 %v645
    %702 = vmatpush.msra.mxu0 %v644
    %703 = vmatpush.msra.mxu0 %v643
    %704 = vmatpush.msra.mxu0 %v642
    %705 = vmatpush.msra.mxu0 %v641
    %706 = vmatmul.f32.gmra.mxu0 %v622
    %v707 = vpop.f32.mrf.mxu0
    %v708 = vadd.f32 %v685, %v707
    %709 = vmatmul.f32.gmra.mxu0 %v623
    %v710 = vpop.f32.mrf.mxu0
    %v711 = vadd.f32 %v688, %v710
    %712 = vdwg.mxu0
    %v713 = vadd.f32 %v708, %v711
    %v714 = vrot.slane %v713, 4
    %v715 = vadd.f32 %v713, %v714
    %v716 = vrot.slane %v715, 2
    %v717 = vadd.f32 %v715, %v716
    %v718 = vrot.slane %v717, 1
    %v719 = vadd.f32 %v717, %v718
    %v720 = vmul.f32 %v708, %v708
    %v721 = vmul.f32 %v711, %v711
    %v722 = vadd.f32 %v720, %v721
    %v723 = vrot.slane %v722, 4
    %v724 = vadd.f32 %v722, %v723
    %v725 = vrot.slane %v724, 2
    %v726 = vadd.f32 %v724, %v725
    %v727 = vrot.slane %v726, 1
    %v728 = vadd.f32 %v726, %v727
    %v729 = vsel %vm211, %v719, %v728
    %730 = vmatpush.msra.mxu0 %v59
    %731 = vmatpush.msra.mxu0 %v58
    %732 = vmatpush.msra.mxu0 %v57
    %733 = vmatpush.msra.mxu0 %v56
    %734 = vmatpush.msra.mxu0 %v55
    %735 = vmatpush.msra.mxu0 %v54
    %736 = vmatpush.msra.mxu0 %v53
    %737 = vmatpush.msra.mxu0 %v52
    %738 = vmatpush.msra.mxu0 %v51
    %739 = vmatpush.msra.mxu0 %v50
    %740 = vmatpush.msra.mxu0 %v49
    %741 = vmatpush.msra.mxu0 %v48
    %742 = vmatpush.msra.mxu0 %v47
    %743 = vmatpush.msra.mxu0 %v46
    %744 = vmatpush.msra.mxu0 %v45
    %745 = vmatpush.msra.mxu0 %v44
    %746 = vmatmul.f32.gmra.mxu0 %v729
    %v747 = vpop.f32.mrf.mxu0
    %v748 = vadd.f32 0.0, %v747
    %749 = vdwg.mxu0
    %v750 = vmul.f32 %v748, %v748
    %v752 = vrot.slane %v750, 7
    %v754 = vsub.f32 %v748, %v752
    %v755 = vperm.slane %v748, 0
    %v756 = vsub.f32 %v708, %v755
    %v757 = vsub.f32 %v711, %v755
    %v758 = vadd.f32 %v754, 1e-08
    %v759 = vrsqrt.pop %v758
    %v760 = vmul.f32 %v759, %v758
    %v761 = vmul.f32 %v760, %v759
    %v762 = vmul.f32 0.5, %v761
    %v763 = vsub.f32 1.5, %v762
    %v764 = vmul.f32 %v759, %v763
    %vm765 = vweird.f32 %v758
    %vm766 = vweird.f32 %v759
    %vm767 = vmor %vm765, %vm766
    %v768 = vsel %vm767, %v759, %v764
    %v769 = vperm.slane %v768, 1
    %v770 = vmul.f32 %v756, %v769
    %v771 = vmul.f32 %v757, %v769
    %v772 = vperm.slane %v658, 0
    %v773 = vmul.f32 %v770, %v772
    %v774 = vmul.f32 %v771, %v772
    %v775 = vperm.slane %v659, 0
    %v776 = vadd.f32 %v773, %v775
    %v777 = vadd.f32 %v774, %v775
    %v778 = vmax.f32 %v776, 0.0
    %v779 = vmax.f32 %v777, 0.0
    %v780 = vxor.u32 %v778, 2147483648
    %v781 = vxor.u32 %v779, 2147483648
    %v782 = vmul.f32 %v780, 1.442695
    %v783 = vpow.pop %v782
    %v784 = vmul.f32 %v781, 1.442695
    %v785 = vpow.pop %v784
    %v786 = vadd.f32 %v783, 1.0
    %v787 = vadd.f32 %v785, 1.0
    %v788 = vrcp.pop %v786
    %v789 = vmul.f32 %v786, %v788
    %v790 = vsub.f32 1.0, %v789
    %v791 = vmul.f32 %v788, %v790
    %v792 = vadd.f32 %v788, %v791
    %vm793 = vweird.f32 %v786
    %vm794 = vweird.f32 %v788
    %vm795 = vmor %vm793, %vm794
    %v796 = vsel %vm795, %v788, %v792
    %v797 = vand.u32 2147483647, %v786
    %vm798 = vcmp.eq.f32.partialorder %v797, 8.507059e+37
    %v799 = vand.u32 %v786, 2147483648
    %v800 = vor.u32 1.1754944e-38, %v799
    %v801 = vsel %vm798, %v800, %v796
    %v802 = vmul.f32 1.0, %v801
    %v803 = vrcp.pop %v787
    %v804 = vmul.f32 %v787, %v803
    %v805 = vsub.f32 1.0, %v804
    %v806 = vmul.f32 %v803, %v805
    %v807 = vadd.f32 %v803, %v806
    %vm808 = vweird.f32 %v787
    %vm809 = vweird.f32 %v803
    %vm810 = vmor %vm808, %vm809
    %v811 = vsel %vm810, %v803, %v807
    %v812 = vand.u32 2147483647, %v787
    %vm813 = vcmp.eq.f32.partialorder %v812, 8.507059e+37
    %v814 = vand.u32 %v787, 2147483648
    %v815 = vor.u32 1.1754944e-38, %v814
    %v816 = vsel %vm813, %v815, %v811
    %v817 = vmul.f32 1.0, %v816
    %v818 = vmul.f32 %v457, %v802
    %v819 = vmul.f32 %v458, %v817
    %v820 = vld [vmem:[%s3 + $0x14] sm:$0x1]
    %v821 = vperm.slane %v820, 0
    %v822 = vmul.f32 %v821, %v818
    %v823 = vmul.f32 %v821, %v819
    %v824 = vadd.f32 %v463, %v822
    %v825 = vadd.f32 %v464, %v823
    %s826 = scalar_lea.vmem [#allocation2], 1024
    %v827 = vld [vmem:[%s826] sm:$0xff]
    %v828 = vld [vmem:[%s826 + $0x8] sm:$0xff]
    %v829 = vld [vmem:[%s826 + $0x10] sm:$0xff]
    %v830 = vld [vmem:[%s826 + $0x18] sm:$0xff]
    %v831 = vld [vmem:[%s826 + $0x20] sm:$0xff]
    %v832 = vld [vmem:[%s826 + $0x28] sm:$0xff]
    %v833 = vld [vmem:[%s826 + $0x30] sm:$0xff]
    %v834 = vld [vmem:[%s826 + $0x38] sm:$0xff]
    %v835 = vld [vmem:[%s826 + $0x40] sm:$0xff]
    %v836 = vld [vmem:[%s826 + $0x48] sm:$0xff]
    %v837 = vld [vmem:[%s826 + $0x50] sm:$0xff]
    %v838 = vld [vmem:[%s826 + $0x58] sm:$0xff]
    %v839 = vld [vmem:[%s826 + $0x60] sm:$0xff]
    %v840 = vld [vmem:[%s826 + $0x68] sm:$0xff]
    %v841 = vld [vmem:[%s826 + $0x70] sm:$0xff]
    %v842 = vld [vmem:[%s826 + $0x78] sm:$0xff]
    %v843 = vld [vmem:[%s826 + $0x80] sm:$0xff]
    %v844 = vld [vmem:[%s826 + $0x88] sm:$0xff]
    %v845 = vld [vmem:[%s826 + $0x90] sm:$0xff]
    %v846 = vld [vmem:[%s826 + $0x98] sm:$0xff]
    %v847 = vld [vmem:[%s826 + $0xa0] sm:$0xff]
    %v848 = vld [vmem:[%s826 + $0xa8] sm:$0xff]
    %v849 = vld [vmem:[%s826 + $0xb0] sm:$0xff]
    %v850 = vld [vmem:[%s826 + $0xb8] sm:$0xff]
    %v851 = vld [vmem:[%s826 + $0xc0] sm:$0xff]
    %v852 = vld [vmem:[%s826 + $0xc8] sm:$0xff]
    %v853 = vld [vmem:[%s826 + $0xd0] sm:$0xff]
    %v854 = vld [vmem:[%s826 + $0xd8] sm:$0xff]
    %v855 = vld [vmem:[%s826 + $0xe0] sm:$0xff]
    %v856 = vld [vmem:[%s826 + $0xe8] sm:$0xff]
    %v857 = vld [vmem:[%s826 + $0xf0] sm:$0xff]
    %v858 = vld [vmem:[%s826 + $0xf8] sm:$0xff]
    %v859 = vld [vmem:[%s3 + $0xd] sm:$0x1]
    %v860 = vld [vmem:[%s3 + $0xe] sm:$0x1]
    %v861 = vld [vmem:[%s3 + $0xf] sm:$0x1]
    %vm862 = vcmp.ge.s32.totalorder %v61, 4
    %vm863 = vcmp.ge.s32.totalorder %v62, 4
    %v864 = vrot.slane %v818, 4
    %v865 = vrot.slane %v819, 4
    %vm866 = vcmp.lt.s32.totalorder %v61, 4
    %v867 = vsel %vm866, %v864, %v865
    %v868 = vsel %vm866, %v865, %v864
    %v869 = vsel %vm862, %v868, 0.0
    %v870 = vsel %vm863, %v867, 0.0
    %v871 = vperm.slane %v859, 0
    %872 = vmatpush.msra.mxu0 %v842
    %873 = vmatpush.msra.mxu0 %v841
    %874 = vmatpush.msra.mxu0 %v840
    %875 = vmatpush.msra.mxu0 %v839
    %876 = vmatpush.msra.mxu0 %v838
    %877 = vmatpush.msra.mxu0 %v837
    %878 = vmatpush.msra.mxu0 %v836
    %879 = vmatpush.msra.mxu0 %v835
    %880 = vmatpush.msra.mxu0 %v834
    %881 = vmatpush.msra.mxu0 %v833
    %882 = vmatpush.msra.mxu0 %v832
    %883 = vmatpush.msra.mxu0 %v831
    %884 = vmatpush.msra.mxu0 %v830
    %885 = vmatpush.msra.mxu0 %v829
    %886 = vmatpush.msra.mxu0 %v828
    %887 = vmatpush.msra.mxu0 %v827
    %888 = vmatmul.f32.gmra.mxu0 %v869
    %v889 = vpop.f32.mrf.mxu0
    %v890 = vadd.f32 %v871, %v889
    %891 = vmatmul.f32.gmra.mxu0 %v870
    %v892 = vpop.f32.mrf.mxu0
    %v893 = vadd.f32 %v871, %v892
    %894 = vdwg.mxu0
    %895 = vmatpush.msra.mxu0 %v858
    %896 = vmatpush.msra.mxu0 %v857
    %897 = vmatpush.msra.mxu0 %v856
    %898 = vmatpush.msra.mxu0 %v855
    %899 = vmatpush.msra.mxu0 %v854
    %900 = vmatpush.msra.mxu0 %v853
    %901 = vmatpush.msra.mxu0 %v852
    %902 = vmatpush.msra.mxu0 %v851
    %903 = vmatpush.msra.mxu0 %v850
    %904 = vmatpush.msra.mxu0 %v849
    %905 = vmatpush.msra.mxu0 %v848
    %906 = vmatpush.msra.mxu0 %v847
    %907 = vmatpush.msra.mxu0 %v846
    %908 = vmatpush.msra.mxu0 %v845
    %909 = vmatpush.msra.mxu0 %v844
    %910 = vmatpush.msra.mxu0 %v843
    %911 = vmatmul.f32.gmra.mxu0 %v818
    %v912 = vpop.f32.mrf.mxu0
    %v913 = vadd.f32 %v890, %v912
    %914 = vmatmul.f32.gmra.mxu0 %v819
    %v915 = vpop.f32.mrf.mxu0
    %v916 = vadd.f32 %v893, %v915
    %917 = vdwg.mxu0
    %v918 = vadd.f32 %v913, %v916
    %v919 = vrot.slane %v918, 4
    %v920 = vadd.f32 %v918, %v919
    %v921 = vrot.slane %v920, 2
    %v922 = vadd.f32 %v920, %v921
    %v923 = vrot.slane %v922, 1
    %v924 = vadd.f32 %v922, %v923
    %v925 = vmul.f32 %v913, %v913
    %v926 = vmul.f32 %v916, %v916
    %v927 = vadd.f32 %v925, %v926
    %v928 = vrot.slane %v927, 4
    %v929 = vadd.f32 %v927, %v928
    %v930 = vrot.slane %v929, 2
    %v931 = vadd.f32 %v929, %v930
    %v932 = vrot.slane %v931, 1
    %v933 = vadd.f32 %v931, %v932
    %v934 = vsel %vm211, %v924, %v933
    %935 = vmatpush.msra.mxu0 %v59
    %936 = vmatpush.msra.mxu0 %v58
    %937 = vmatpush.msra.mxu0 %v57
    %938 = vmatpush.msra.mxu0 %v56
    %939 = vmatpush.msra.mxu0 %v55
    %940 = vmatpush.msra.mxu0 %v54
    %941 = vmatpush.msra.mxu0 %v53
    %942 = vmatpush.msra.mxu0 %v52
    %943 = vmatpush.msra.mxu0 %v51
    %944 = vmatpush.msra.mxu0 %v50
    %945 = vmatpush.msra.mxu0 %v49
    %946 = vmatpush.msra.mxu0 %v48
    %947 = vmatpush.msra.mxu0 %v47
    %948 = vmatpush.msra.mxu0 %v46
    %949 = vmatpush.msra.mxu0 %v45
    %950 = vmatpush.msra.mxu0 %v44
    %951 = vmatmul.f32.gmra.mxu0 %v934
    %v952 = vpop.f32.mrf.mxu0
    %v953 = vadd.f32 0.0, %v952
    %954 = vdwg.mxu0
    %v955 = vmul.f32 %v953, %v953
    %v957 = vrot.slane %v955, 7
    %v959 = vsub.f32 %v953, %v957
    %v960 = vperm.slane %v953, 0
    %v961 = vsub.f32 %v913, %v960
    %v962 = vsub.f32 %v916, %v960
    %v963 = vadd.f32 %v959, 1e-08
    %v964 = vrsqrt.pop %v963
    %v965 = vmul.f32 %v964, %v963
    %v966 = vmul.f32 %v965, %v964
    %v967 = vmul.f32 0.5, %v966
    %v968 = vsub.f32 1.5, %v967
    %v969 = vmul.f32 %v964, %v968
    %vm970 = vweird.f32 %v963
    %vm971 = vweird.f32 %v964
    %vm972 = vmor %vm970, %vm971
    %v973 = vsel %vm972, %v964, %v969
    %v974 = vperm.slane %v973, 1
    %v975 = vmul.f32 %v961, %v974
    %v976 = vmul.f32 %v962, %v974
    %v977 = vperm.slane %v860, 0
    %v978 = vmul.f32 %v975, %v977
    %v979 = vmul.f32 %v976, %v977
    %v980 = vperm.slane %v861, 0
    %v981 = vadd.f32 %v978, %v980
    %v982 = vadd.f32 %v979, %v980
    %v983 = vmax.f32 %v981, 0.0
    %v984 = vmax.f32 %v982, 0.0
    %s985 = scalar_lea.vmem [#allocation2], 1280
    %v986 = vld [vmem:[%s985] sm:$0xff]
    %v987 = vld [vmem:[%s985 + $0x8] sm:$0xff]
    %v988 = vld [vmem:[%s985 + $0x10] sm:$0xff]
    %v989 = vld [vmem:[%s985 + $0x18] sm:$0xff]
    %v990 = vld [vmem:[%s985 + $0x20] sm:$0xff]
    %v991 = vld [vmem:[%s985 + $0x28] sm:$0xff]
    %v992 = vld [vmem:[%s985 + $0x30] sm:$0xff]
    %v993 = vld [vmem:[%s985 + $0x38] sm:$0xff]
    %v994 = vld [vmem:[%s985 + $0x40] sm:$0xff]
    %v995 = vld [vmem:[%s985 + $0x48] sm:$0xff]
    %v996 = vld [vmem:[%s985 + $0x50] sm:$0xff]
    %v997 = vld [vmem:[%s985 + $0x58] sm:$0xff]
    %v998 = vld [vmem:[%s985 + $0x60] sm:$0xff]
    %v999 = vld [vmem:[%s985 + $0x68] sm:$0xff]
    %v1000 = vld [vmem:[%s985 + $0x70] sm:$0xff]
    %v1001 = vld [vmem:[%s985 + $0x78] sm:$0xff]
    %v1002 = vld [vmem:[%s985 + $0x80] sm:$0xff]
    %v1003 = vld [vmem:[%s985 + $0x88] sm:$0xff]
    %v1004 = vld [vmem:[%s985 + $0x90] sm:$0xff]
    %v1005 = vld [vmem:[%s985 + $0x98] sm:$0xff]
    %v1006 = vld [vmem:[%s985 + $0xa0] sm:$0xff]
    %v1007 = vld [vmem:[%s985 + $0xa8] sm:$0xff]
    %v1008 = vld [vmem:[%s985 + $0xb0] sm:$0xff]
    %v1009 = vld [vmem:[%s985 + $0xb8] sm:$0xff]
    %v1010 = vld [vmem:[%s985 + $0xc0] sm:$0xff]
    %v1011 = vld [vmem:[%s985 + $0xc8] sm:$0xff]
    %v1012 = vld [vmem:[%s985 + $0xd0] sm:$0xff]
    %v1013 = vld [vmem:[%s985 + $0xd8] sm:$0xff]
    %v1014 = vld [vmem:[%s985 + $0xe0] sm:$0xff]
    %v1015 = vld [vmem:[%s985 + $0xe8] sm:$0xff]
    %v1016 = vld [vmem:[%s985 + $0xf0] sm:$0xff]
    %v1017 = vld [vmem:[%s985 + $0xf8] sm:$0xff]
    %v1018 = vld [vmem:[%s3 + $0x10] sm:$0x1]
    %v1019 = vld [vmem:[%s3 + $0x11] sm:$0x1]
    %v1020 = vld [vmem:[%s3 + $0x12] sm:$0x1]
    %v1021 = vrot.slane %v983, 4
    %v1022 = vrot.slane %v984, 4
    %v1023 = vsel %vm866, %v1021, %v1022
    %v1024 = vsel %vm866, %v1022, %v1021
    %v1025 = vsel %vm862, %v1024, 0.0
    %v1026 = vsel %vm863, %v1023, 0.0
    %v1027 = vperm.slane %v1018, 0
    %1028 = vmatpush.msra.mxu0 %v1001
    %1029 = vmatpush.msra.mxu0 %v1000
    %1030 = vmatpush.msra.mxu0 %v999
    %1031 = vmatpush.msra.mxu0 %v998
    %1032 = vmatpush.msra.mxu0 %v997
    %1033 = vmatpush.msra.mxu0 %v996
    %1034 = vmatpush.msra.mxu0 %v995
    %1035 = vmatpush.msra.mxu0 %v994
    %1036 = vmatpush.msra.mxu0 %v993
    %1037 = vmatpush.msra.mxu0 %v992
    %1038 = vmatpush.msra.mxu0 %v991
    %1039 = vmatpush.msra.mxu0 %v990
    %1040 = vmatpush.msra.mxu0 %v989
    %1041 = vmatpush.msra.mxu0 %v988
    %1042 = vmatpush.msra.mxu0 %v987
    %1043 = vmatpush.msra.mxu0 %v986
    %1044 = vmatmul.f32.gmra.mxu0 %v1025
    %v1045 = vpop.f32.mrf.mxu0
    %v1046 = vadd.f32 %v1027, %v1045
    %1047 = vmatmul.f32.gmra.mxu0 %v1026
    %v1048 = vpop.f32.mrf.mxu0
    %v1049 = vadd.f32 %v1027, %v1048
    %1050 = vdwg.mxu0
    %1051 = vmatpush.msra.mxu0 %v1017
    %1052 = vmatpush.msra.mxu0 %v1016
    %1053 = vmatpush.msra.mxu0 %v1015
    %1054 = vmatpush.msra.mxu0 %v1014
    %1055 = vmatpush.msra.mxu0 %v1013
    %1056 = vmatpush.msra.mxu0 %v1012
    %1057 = vmatpush.msra.mxu0 %v1011
    %1058 = vmatpush.msra.mxu0 %v1010
    %1059 = vmatpush.msra.mxu0 %v1009
    %1060 = vmatpush.msra.mxu0 %v1008
    %1061 = vmatpush.msra.mxu0 %v1007
    %1062 = vmatpush.msra.mxu0 %v1006
    %1063 = vmatpush.msra.mxu0 %v1005
    %1064 = vmatpush.msra.mxu0 %v1004
    %1065 = vmatpush.msra.mxu0 %v1003
    %1066 = vmatpush.msra.mxu0 %v1002
    %1067 = vmatmul.f32.gmra.mxu0 %v983
    %v1068 = vpop.f32.mrf.mxu0
    %v1069 = vadd.f32 %v1046, %v1068
    %1070 = vmatmul.f32.gmra.mxu0 %v984
    %v1071 = vpop.f32.mrf.mxu0
    %v1072 = vadd.f32 %v1049, %v1071
    %1073 = vdwg.mxu0
    %v1074 = vadd.f32 %v1069, %v1072
    %v1075 = vrot.slane %v1074, 4
    %v1076 = vadd.f32 %v1074, %v1075
    %v1077 = vrot.slane %v1076, 2
    %v1078 = vadd.f32 %v1076, %v1077
    %v1079 = vrot.slane %v1078, 1
    %v1080 = vadd.f32 %v1078, %v1079
    %v1081 = vmul.f32 %v1069, %v1069
    %v1082 = vmul.f32 %v1072, %v1072
    %v1083 = vadd.f32 %v1081, %v1082
    %v1084 = vrot.slane %v1083, 4
    %v1085 = vadd.f32 %v1083, %v1084
    %v1086 = vrot.slane %v1085, 2
    %v1087 = vadd.f32 %v1085, %v1086
    %v1088 = vrot.slane %v1087, 1
    %v1089 = vadd.f32 %v1087, %v1088
    %v1090 = vsel %vm211, %v1080, %v1089
    %1091 = vmatpush.msra.mxu0 %v59
    %1092 = vmatpush.msra.mxu0 %v58
    %1093 = vmatpush.msra.mxu0 %v57
    %1094 = vmatpush.msra.mxu0 %v56
    %1095 = vmatpush.msra.mxu0 %v55
    %1096 = vmatpush.msra.mxu0 %v54
    %1097 = vmatpush.msra.mxu0 %v53
    %1098 = vmatpush.msra.mxu0 %v52
    %1099 = vmatpush.msra.mxu0 %v51
    %1100 = vmatpush.msra.mxu0 %v50
    %1101 = vmatpush.msra.mxu0 %v49
    %1102 = vmatpush.msra.mxu0 %v48
    %1103 = vmatpush.msra.mxu0 %v47
    %1104 = vmatpush.msra.mxu0 %v46
    %1105 = vmatpush.msra.mxu0 %v45
    %1106 = vmatpush.msra.mxu0 %v44
    %1107 = vmatmul.f32.gmra.mxu0 %v1090
    %v1108 = vpop.f32.mrf.mxu0
    %v1109 = vadd.f32 0.0, %v1108
    %1110 = vdwg.mxu0
    %v1111 = vmul.f32 %v1109, %v1109
    %v1113 = vrot.slane %v1111, 7
    %v1115 = vsub.f32 %v1109, %v1113
    %v1116 = vperm.slane %v1109, 0
    %v1117 = vsub.f32 %v1069, %v1116
    %v1118 = vsub.f32 %v1072, %v1116
    %v1119 = vadd.f32 %v1115, 1e-08
    %v1120 = vrsqrt.pop %v1119
    %v1121 = vmul.f32 %v1120, %v1119
    %v1122 = vmul.f32 %v1121, %v1120
    %v1123 = vmul.f32 0.5, %v1122
    %v1124 = vsub.f32 1.5, %v1123
    %v1125 = vmul.f32 %v1120, %v1124
    %vm1126 = vweird.f32 %v1119
    %vm1127 = vweird.f32 %v1120
    %vm1128 = vmor %vm1126, %vm1127
    %v1129 = vsel %vm1128, %v1120, %v1125
    %v1130 = vperm.slane %v1129, 1
    %v1131 = vmul.f32 %v1117, %v1130
    %v1132 = vmul.f32 %v1118, %v1130
    %v1133 = vperm.slane %v1019, 0
    %v1134 = vmul.f32 %v1131, %v1133
    %v1135 = vmul.f32 %v1132, %v1133
    %v1136 = vperm.slane %v1020, 0
    %v1137 = vadd.f32 %v1134, %v1136
    %v1138 = vadd.f32 %v1135, %v1136
    %v1139 = vmax.f32 %v1137, 0.0
    %v1140 = vmax.f32 %v1138, 0.0
    %v1141 = vxor.u32 %v1139, 2147483648
    %v1142 = vxor.u32 %v1140, 2147483648
    %v1143 = vmul.f32 %v1141, 1.442695
    %v1144 = vpow.pop %v1143
    %v1145 = vmul.f32 %v1142, 1.442695
    %v1146 = vpow.pop %v1145
    %v1147 = vadd.f32 %v1144, 1.0
    %v1148 = vadd.f32 %v1146, 1.0
    %v1149 = vrcp.pop %v1147
    %v1150 = vmul.f32 %v1147, %v1149
    %v1151 = vsub.f32 1.0, %v1150
    %v1152 = vmul.f32 %v1149, %v1151
    %v1153 = vadd.f32 %v1149, %v1152
    %vm1154 = vweird.f32 %v1147
    %vm1155 = vweird.f32 %v1149
    %vm1156 = vmor %vm1154, %vm1155
    %v1157 = vsel %vm1156, %v1149, %v1153
    %v1158 = vand.u32 2147483647, %v1147
    %vm1159 = vcmp.eq.f32.partialorder %v1158, 8.507059e+37
    %v1160 = vand.u32 %v1147, 2147483648
    %v1161 = vor.u32 1.1754944e-38, %v1160
    %v1162 = vsel %vm1159, %v1161, %v1157
    %v1163 = vmul.f32 1.0, %v1162
    %v1164 = vrcp.pop %v1148
    %v1165 = vmul.f32 %v1148, %v1164
    %v1166 = vsub.f32 1.0, %v1165
    %v1167 = vmul.f32 %v1164, %v1166
    %v1168 = vadd.f32 %v1164, %v1167
    %vm1169 = vweird.f32 %v1148
    %vm1170 = vweird.f32 %v1164
    %vm1171 = vmor %vm1169, %vm1170
    %v1172 = vsel %vm1171, %v1164, %v1168
    %v1173 = vand.u32 2147483647, %v1148
    %vm1174 = vcmp.eq.f32.partialorder %v1173, 8.507059e+37
    %v1175 = vand.u32 %v1148, 2147483648
    %v1176 = vor.u32 1.1754944e-38, %v1175
    %v1177 = vsel %vm1174, %v1176, %v1172
    %v1178 = vmul.f32 1.0, %v1177
    %v1179 = vmul.f32 %v818, %v1163
    %v1180 = vmul.f32 %v819, %v1178
    %v1181 = vld [vmem:[%s3 + $0x15] sm:$0x1]
    %v1182 = vperm.slane %v1181, 0
    %v1183 = vmul.f32 %v1182, %v1179
    %v1184 = vmul.f32 %v1182, %v1180
    %v1185 = vadd.f32 %v824, %v1183
    %v1186 = vadd.f32 %v825, %v1184
    %v1187 = vadd.f32 %v1185, %v1186
    %v1188 = vrot.slane %v1187, 4
    %v1189 = vadd.f32 %v1187, %v1188
    %v1190 = vrot.slane %v1189, 2
    %v1191 = vadd.f32 %v1189, %v1190
    %v1192 = vrot.slane %v1191, 1
    %v1193 = vadd.f32 %v1191, %v1192
    %v1194 = vld [vmem:[%s5] sm:$0xff]
    %v1195 = vld [vmem:[%s5 + $0x8] sm:$0xff]
    %v1196 = vld [vmem:[%s5 + $0x10] sm:$0xff]
    %v1197 = vld [vmem:[%s5 + $0x18] sm:$0xff]
    %v1198 = vld [vmem:[%s5 + $0x20] sm:$0xff]
    %v1199 = vld [vmem:[%s5 + $0x28] sm:$0xff]
    %v1200 = vld [vmem:[%s5 + $0x30] sm:$0xff]
    %v1201 = vld [vmem:[%s5 + $0x38] sm:$0xff]
    %v1202 = vld [vmem:[%s5 + $0x40] sm:$0xff]
    %v1203 = vld [vmem:[%s5 + $0x48] sm:$0xff]
    %v1204 = vld [vmem:[%s5 + $0x50] sm:$0xff]
    %v1205 = vld [vmem:[%s5 + $0x58] sm:$0xff]
    %v1206 = vld [vmem:[%s5 + $0x60] sm:$0xff]
    %v1207 = vld [vmem:[%s5 + $0x68] sm:$0xff]
    %v1208 = vld [vmem:[%s5 + $0x70] sm:$0xff]
    %v1209 = vld [vmem:[%s5 + $0x78] sm:$0xff]
    %1210 = vmatpush.msra.mxu0 %v1209
    %1211 = vmatpush.msra.mxu0 %v1208
    %1212 = vmatpush.msra.mxu0 %v1207
    %1213 = vmatpush.msra.mxu0 %v1206
    %1214 = vmatpush.msra.mxu0 %v1205
    %1215 = vmatpush.msra.mxu0 %v1204
    %1216 = vmatpush.msra.mxu0 %v1203
    %1217 = vmatpush.msra.mxu0 %v1202
    %1218 = vmatpush.msra.mxu0 %v1201
    %1219 = vmatpush.msra.mxu0 %v1200
    %1220 = vmatpush.msra.mxu0 %v1199
    %1221 = vmatpush.msra.mxu0 %v1198
    %1222 = vmatpush.msra.mxu0 %v1197
    %1223 = vmatpush.msra.mxu0 %v1196
    %1224 = vmatpush.msra.mxu0 %v1195
    %1225 = vmatpush.msra.mxu0 %v1194
    %1226 = vmatmul.f32.gmra.mxu0 %v1193
    %v1227 = vpop.f32.mrf.mxu0
    %v1228 = vadd.f32 0.0, %v1227
    %1229 = vdwg.mxu0
    %v1230 = vmax.f32 %v1228, 0.0
    %v1231 = vld [vmem:[%s3 + $0x16] sm:$0x1]
    %v1232 = vld [vmem:[%s6] sm:$0xff]
    %v1233 = vld [vmem:[%s6 + $0x8] sm:$0xff]
    %v1234 = vld [vmem:[%s6 + $0x10] sm:$0xff]
    %v1235 = vld [vmem:[%s6 + $0x18] sm:$0xff]
    %v1236 = vld [vmem:[%s6 + $0x20] sm:$0xff]
    %v1237 = vld [vmem:[%s6 + $0x28] sm:$0xff]
    %v1238 = vld [vmem:[%s6 + $0x30] sm:$0xff]
    %v1239 = vld [vmem:[%s6 + $0x38] sm:$0xff]
    %vm1240 = vcmask 523264
    %v1242 = vsel %vm1240, %v1230, 0
    %1244 = vmatpush.msra.mxu0 0.0
    %1245 = vmatpush.msra.mxu0 0.0
    %1246 = vmatpush.msra.mxu0 0.0
    %1247 = vmatpush.msra.mxu0 0.0
    %1248 = vmatpush.msra.mxu0 0.0
    %1249 = vmatpush.msra.mxu0 0.0
    %1250 = vmatpush.msra.mxu0 0.0
    %1251 = vmatpush.msra.mxu0 0.0
    %1252 = vmatpush.msra.mxu0 %v1239
    %1253 = vmatpush.msra.mxu0 %v1238
    %1254 = vmatpush.msra.mxu0 %v1237
    %1255 = vmatpush.msra.mxu0 %v1236
    %1256 = vmatpush.msra.mxu0 %v1235
    %1257 = vmatpush.msra.mxu0 %v1234
    %1258 = vmatpush.msra.mxu0 %v1233
    %1259 = vmatpush.msra.mxu0 %v1232
    %1260 = vmatmul.f32.gmra.mxu0 %v1242
    %v1261 = vpop.f32.mrf.mxu0
    %v1262 = vadd.f32 %v1231, %v1261
    %1263 = vdwg.mxu0
    %vm1264 = vcmask 57344
    %1265 = vst.msk [vmem:[%s7] sm:$0x1] %vm1264, %v1262
    // Predicated region
    $region34: #{timnet_forward.1} parent=1 // pred_check
      _
    $region35: #{timnet_forward.1} parent=1 // pred_check_branch
      %1267 = sbr.rel (0) target = $region37
    $region36: #{timnet_forward.1} parent=1 // pred_region
      _
    $region37: #{timnet_forward.1} parent=1 // pred_fallthru
      _
    // Predicated region
    $region38: #{timnet_forward.1} parent=1 // pred_check
      _
    $region39: #{timnet_forward.1} parent=1 // pred_check_branch
      %1269 = sbr.rel (0) target = $region41
    $region40: #{timnet_forward.1} parent=1 // pred_region
      _
    $region41: #{timnet_forward.1} parent=1 // pred_fallthru
      _
    %1270 = vsyncpa [#allocation3], 1

</llo_original>
